<compile_context>
chip_gen: v6e
topology: v6e:2x2x1
jax: 0.10.0
libtpu: 0.0.40
codegen_flags: <defaults>
</compile_context>

<pallas_src>
import math
import jax
import jax.numpy as jnp
import numpy as np
from jax.experimental import pallas as pl
from jax.experimental.pallas import tpu as pltpu

EPS = 1e-5      # nn.LayerNorm default eps
LANE = 128      # TPU lane width


def _round_up(n, m):
    return ((n + m - 1) // m) * m


def _gelu_exact(x):
    # PyTorch nn.GELU() default = exact erf-based GELU.
    # TODO(synk): tanh-approx GELU would move this to the EUP slot but breaks exact parity.
    return 0.5 * x * (1.0 + jax.lax.erf(x * (1.0 / math.sqrt(2.0))))


def _layer_norm_lanepadded(v, gamma, beta, inv_d):
    # v is lane-padded with exact zeros beyond the real D columns, so sums over the
    # padded width equal sums over the real columns; divide by the REAL D (inv_d = 1/D).
    s1 = jnp.sum(v, axis=-1, keepdims=True)
    s2 = jnp.sum(v * v, axis=-1, keepdims=True)
    mu = s1 * inv_d
    var = s2 * inv_d - mu * mu                 # biased variance (matches nn.LayerNorm)
    # gamma/beta are zero in padded lanes -> padded output lanes stay exactly zero.
    return (v - mu) * jax.lax.rsqrt(var + EPS) * gamma + beta


def _make_kernel(d_real):
    inv_d = 1.0 / float(d_real)
    bf16 = jnp.bfloat16

    def kernel(x_ref, t_ref, pe_ref,
               ln1g_ref, ln1b_ref,
               w1_ref, b1_ref,
               w2_ref, b2_ref,
               w3_ref, b3_ref,
               ln2g_ref, ln2b_ref,
               wo_ref, bo_ref,
               out_ref):
        # ---- fused elementwise glue (VPU): timestep broadcast + positional encoding ----
        h = (x_ref[0].astype(jnp.float32)           # (ts, Dp)
             + t_ref[0].astype(jnp.float32)         # (1, Dp) broadcast over rows
             + pe_ref[...].astype(jnp.float32))     # (ts, Dp)

        # ---- mlp_processor: LN -> Lin+GELU -> Lin+GELU -> Lin ----
        h = _layer_norm_lanepadded(h, ln1g_ref[...], ln1b_ref[...], inv_d)
        h = jnp.dot(h.astype(bf16), w1_ref[...],
                    preferred_element_type=jnp.float32) + b1_ref[...]
        h = _gelu_exact(h)
        h = jnp.dot(h.astype(bf16), w2_ref[...],
                    preferred_element_type=jnp.float32) + b2_ref[...]
        h = _gelu_exact(h)
        h = jnp.dot(h.astype(bf16), w3_ref[...],
                    preferred_element_type=jnp.float32) + b3_ref[...]

        # ---- output_norm + output_head ----
        h = _layer_norm_lanepadded(h, ln2g_ref[...], ln2b_ref[...], inv_d)
        out = jnp.dot(h.astype(bf16), wo_ref[...],
                      preferred_element_type=jnp.float32) + bo_ref[...]
        out_ref[0] = out.astype(out_ref.dtype)

    return kernel


def mdb_block_forward(x, t_embed_proj, params, *, seq_tile=256):
    """Pallas implementation of MDBBlockEvolved.forward (MLP fallback path, eval mode)."""
    B, S, D = x.shape
    H = params["w1"].shape[1]
    OUT = params["wo"].shape[1]

    Dp = _round_up(D, LANE)
    Hp = _round_up(H, LANE)
    OUTp = _round_up(OUT, LANE)

    # Token (sequence) tile: as large as possible per batch row, capped at seq_tile,
    # always a multiple of 8 sublanes. S is padded up to a whole number of tiles.
    ts = min(_round_up(seq_tile, 8), _round_up(S, 8))
    S_pad = _round_up(S, ts)

    def pad_to(a, shape):
        pads = [(0, t - s) for s, t in zip(a.shape, shape)]
        return jnp.pad(a, pads) if any(p[1] for p in pads) else a

    # ---- lane/sublane zero-padding of inputs & params (done once, outside the kernel) ----
    xp = pad_to(x, (B, S_pad, Dp))
    tp = pad_to(t_embed_proj, (B, Dp)).reshape(B, 1, Dp)
    pe = pad_to(params["pe"][:S], (S_pad, Dp))

    bf16 = jnp.bfloat16
    ln1g = pad_to(params["ln1_g"], (1, Dp)); ln1b = pad_to(params["ln1_b"], (1, Dp))
    w1 = pad_to(params["w1"], (Dp, Hp)).astype(bf16); b1 = pad_to(params["b1"], (1, Hp))
    w2 = pad_to(params["w2"], (Hp, Hp)).astype(bf16); b2 = pad_to(params["b2"], (1, Hp))
    w3 = pad_to(params["w3"], (Hp, Dp)).astype(bf16); b3 = pad_to(params["b3"], (1, Dp))
    ln2g = pad_to(params["ln2_g"], (1, Dp)); ln2b = pad_to(params["ln2_b"], (1, Dp))
    wo = pad_to(params["wo"], (Dp, OUTp)).astype(bf16); bo = pad_to(params["bo"], (1, OUTp))

    weight_args = (ln1g, ln1b, w1, b1, w2, b2, w3, b3, ln2g, ln2b, wo, bo)

    def full(shape):
        n = len(shape)
        return pl.BlockSpec(shape, lambda b, s, _n=n: (0,) * _n)

    grid = (B, S_pad // ts)

    # VMEM budget: double-buffered activation tiles + weight residency + f32 intermediates.
    # TODO(synk): at large D/H mark the constant-index weight specs pipeline_mode=pl.Buffered(1)
    # to avoid pointless double-buffering of weights (matters on v7x's 64 MiB VMEM).
    act_tile_bytes = (ts * Dp + Dp + ts * Dp + ts * OUTp) * 4
    w_bytes = sum(int(np.prod(a.shape)) * a.dtype.itemsize for a in weight_args)
    vmem_limit = 2 * act_tile_bytes + 2 * w_bytes + 6 * ts * max(Hp, Dp, OUTp) * 4 + (8 << 20)
    vmem_limit = int(max(16 << 20, min(vmem_limit, 48 << 20)))

    out = pl.pallas_call(
        _make_kernel(D),
        out_shape=jax.ShapeDtypeStruct((B, S_pad, OUTp), x.dtype),
        grid_spec=pltpu.PrefetchScalarGridSpec(
            num_scalar_prefetch=0,
            grid=grid,
            in_specs=[
                pl.BlockSpec((1, ts, Dp), lambda b, s: (b, s, 0)),   # x tile
                pl.BlockSpec((1, 1, Dp), lambda b, s: (b, 0, 0)),    # t_embed_proj (per batch)
                pl.BlockSpec((ts, Dp), lambda b, s: (s, 0)),         # positional encoding tile
                full((1, Dp)), full((1, Dp)),                        # mlp LayerNorm gamma/beta
                full((Dp, Hp)), full((1, Hp)),                       # Linear(D,H)
                full((Hp, Hp)), full((1, Hp)),                       # Linear(H,H)
                full((Hp, Dp)), full((1, Dp)),                       # Linear(H,D)
                full((1, Dp)), full((1, Dp)),                        # output_norm gamma/beta
                full((Dp, OUTp)), full((1, OUTp)),                   # output_head
            ],
            out_specs=pl.BlockSpec((1, ts, OUTp), lambda b, s: (b, s, 0)),
        ),
        compiler_params=pltpu.CompilerParams(
            dimension_semantics=("parallel", "parallel"),
            vmem_limit_bytes=vmem_limit),
    )(xp, tp, pe, *weight_args)

    prediction = out[:, :S, :OUT]
    new_mamba_state = None   # MLP fallback path -> forward returns None for the state
    return prediction, new_mamba_state


# ---------------------------------------------------------------------------
# Parameter construction (deterministic, in-script)
# ---------------------------------------------------------------------------
def sinusoidal_pe(max_len, d_model):
    position = np.arange(max_len, dtype=np.float32)[:, None]
    div_term = np.exp(np.arange(0, d_model, 2, dtype=np.float32)
                      * (-math.log(10000.0) / float(d_model)))
    pe = np.zeros((max_len, d_model), dtype=np.float32)
    pe[:, 0::2] = np.sin(position * div_term)
    if d_model > 1:
        pe[:, 1::2] = np.cos(position * div_term[: d_model // 2])
    return jnp.asarray(pe)


def xavier_uniform(key, fan_in, fan_out):
    limit = math.sqrt(6.0 / (fan_in + fan_out))
    # stored as (in, out) so the kernel computes x @ W  (== x @ torch_weight.T)
    return jax.random.uniform(key, (fan_in, fan_out), jnp.float32, -limit, limit)


def init_params(key, embed_dim, hidden_dim, out_dim, max_len=128):
    ks = jax.random.split(key, 4)
    return {
        "pe": sinusoidal_pe(max_len, embed_dim),
        # mlp_processor[0] = LayerNorm(embed_dim)
        "ln1_g": jnp.ones((1, embed_dim), jnp.float32),
        "ln1_b": jnp.zeros((1, embed_dim), jnp.float32),
        # mlp_processor[1] = Linear(embed_dim, hidden_dim)  (xavier_uniform, zero bias)
        "w1": xavier_uniform(ks[0], embed_dim, hidden_dim),
        "b1": jnp.zeros((1, hidden_dim), jnp.float32),
        # mlp_processor[3] = Linear(hidden_dim, hidden_dim) (mamba_layers=2 -> one extra block)
        "w2": xavier_uniform(ks[1], hidden_dim, hidden_dim),
        "b2": jnp.zeros((1, hidden_dim), jnp.float32),
        # mlp_processor[-1] = Linear(hidden_dim, embed_dim)
        "w3": xavier_uniform(ks[2], hidden_dim, embed_dim),
        "b3": jnp.zeros((1, embed_dim), jnp.float32),
        # output_norm = LayerNorm(embed_dim)
        "ln2_g": jnp.ones((1, embed_dim), jnp.float32),
        "ln2_b": jnp.zeros((1, embed_dim), jnp.float32),
        # output_head = Linear(embed_dim, out_dim)   (prediction_type='noise' -> out_dim=embed_dim)
        "wo": xavier_uniform(ks[3], embed_dim, out_dim),
        "bo": jnp.zeros((1, out_dim), jnp.float32),
    }
    # embedding.weight and time_proj exist in __init__ but are unused by forward().


# ---------------------------------------------------------------------------
# Pure-JAX reference (matmul_dtype lets us validate the bf16-operand path tightly
# and the exact-f32 PyTorch math loosely)
# ---------------------------------------------------------------------------
def reference_forward(x, t_embed_proj, params, *, matmul_dtype=jnp.float32):
    B, S, D = x.shape
    h = x + t_embed_proj[:, None, :] + params["pe"][:S][None, :, :]

    def ln(v, g, b):
        mu = v.mean(-1, keepdims=True)
        var = ((v - mu) ** 2).mean(-1, keepdims=True)
        return (v - mu) / jnp.sqrt(var + EPS) * g + b

    def mm(a, w):
        return jnp.dot(a.astype(matmul_dtype), w.astype(matmul_dtype),
                       preferred_element_type=jnp.float32)

    h = ln(h, params["ln1_g"][0], params["ln1_b"][0])
    h = jax.nn.gelu(mm(h, params["w1"]) + params["b1"][0], approximate=False)
    h = jax.nn.gelu(mm(h, params["w2"]) + params["b2"][0], approximate=False)
    h = mm(h, params["w3"]) + params["b3"][0]
    h = ln(h, params["ln2_g"][0], params["ln2_b"][0])
    return mm(h, params["wo"]) + params["bo"][0]


if __name__ == "__main__":
    # Small config consistent with the module:
    #   embed_dim=32, expansion_factor=2.0 -> hidden_dim=64, mamba_layers=2,
    #   vocab_size=100, prediction_type='noise' -> output_dim = embed_dim.
    B, S, D = 2, 64, 32
    H = int(D * 2.0)
    OUT = D

    key = jax.random.PRNGKey(0)
    kx, kt, kp = jax.random.split(key, 3)
    x = jax.random.normal(kx, (B, S, D), jnp.float32)            # noisy embeddings
    t_embed_proj = jax.random.normal(kt, (B, D), jnp.float32)    # projected timestep embedding
    params = init_params(kp, D, H, OUT, max_len=128)

    pred, state = mdb_block_forward(x, t_embed_proj, params)
    pred = jax.block_until_ready(pred)
    assert pred.shape == (B, S, OUT)
    assert state is None

    # Tight check vs a reference using the same bf16 matmul operands / f32 accumulation.
    ref_bf16 = reference_forward(x, t_embed_proj, params, matmul_dtype=jnp.bfloat16)
    np.testing.assert_allclose(np.asarray(pred), np.asarray(ref_bf16), rtol=5e-3, atol=5e-3)

    # Loose check vs the exact-f32 PyTorch-faithful math (bf16 operands cost ~1e-2 abs).
    ref_f32 = reference_forward(x, t_embed_proj, params, matmul_dtype=jnp.float32)
    np.testing.assert_allclose(np.asarray(pred), np.asarray(ref_f32), rtol=1e-1, atol=1e-1)

    # TODO(synk): Mamba SSM / BiMamba branch not implemented — `mamba-ssm` is unavailable,
    # so the module itself falls back to the MLP processor path, which this kernel
    # reproduces. Dropout is identity (eval mode).
    print("KERNEL_OK")
</pallas_src>

<mosaic_0001>
module attributes {stable_mosaic.version = 11 : i64} {
  func.func @kernel(%arg0: i32, %arg1: i32, %arg2: memref<1x64x128xf32, #tpu.memory_space<vmem>>, %arg3: memref<1x1x128xf32, #tpu.memory_space<vmem>>, %arg4: memref<64x128xf32, #tpu.memory_space<vmem>>, %arg5: memref<1x128xf32, #tpu.memory_space<vmem>>, %arg6: memref<1x128xf32, #tpu.memory_space<vmem>>, %arg7: memref<128x128xbf16, #tpu.memory_space<vmem>>, %arg8: memref<1x128xf32, #tpu.memory_space<vmem>>, %arg9: memref<128x128xbf16, #tpu.memory_space<vmem>>, %arg10: memref<1x128xf32, #tpu.memory_space<vmem>>, %arg11: memref<128x128xbf16, #tpu.memory_space<vmem>>, %arg12: memref<1x128xf32, #tpu.memory_space<vmem>>, %arg13: memref<1x128xf32, #tpu.memory_space<vmem>>, %arg14: memref<1x128xf32, #tpu.memory_space<vmem>>, %arg15: memref<128x128xbf16, #tpu.memory_space<vmem>>, %arg16: memref<1x128xf32, #tpu.memory_space<vmem>>, %arg17: memref<1x64x128xf32, #tpu.memory_space<vmem>>) attributes {dimension_semantics = [#tpu.dimension_semantics<parallel>, #tpu.dimension_semantics<parallel>], iteration_bounds = array<i64: 2, 1>, scalar_prefetch = 0 : i64, scratch_operands = 0 : i64, tpu.core_type = #tpu.core_type<tc>, window_params = [{transform_indices = @transform_0, window_bounds = array<i64: 1, 64, 128>}, {transform_indices = @transform_1, window_bounds = array<i64: 1, 1, 128>}, {transform_indices = @transform_2, window_bounds = array<i64: 64, 128>}, {pipeline_mode = #tpu.pipeline_mode<synchronous>, transform_indices = @transform_3, window_bounds = array<i64: 1, 128>}, {pipeline_mode = #tpu.pipeline_mode<synchronous>, transform_indices = @transform_4, window_bounds = array<i64: 1, 128>}, {pipeline_mode = #tpu.pipeline_mode<synchronous>, transform_indices = @transform_5, window_bounds = array<i64: 128, 128>}, {pipeline_mode = #tpu.pipeline_mode<synchronous>, transform_indices = @transform_6, window_bounds = array<i64: 1, 128>}, {pipeline_mode = #tpu.pipeline_mode<synchronous>, transform_indices = @transform_7, window_bounds = array<i64: 128, 128>}, {pipeline_mode = #tpu.pipeline_mode<synchronous>, transform_indices = @transform_8, window_bounds = array<i64: 1, 128>}, {pipeline_mode = #tpu.pipeline_mode<synchronous>, transform_indices = @transform_9, window_bounds = array<i64: 128, 128>}, {pipeline_mode = #tpu.pipeline_mode<synchronous>, transform_indices = @transform_10, window_bounds = array<i64: 1, 128>}, {pipeline_mode = #tpu.pipeline_mode<synchronous>, transform_indices = @transform_11, window_bounds = array<i64: 1, 128>}, {pipeline_mode = #tpu.pipeline_mode<synchronous>, transform_indices = @transform_12, window_bounds = array<i64: 1, 128>}, {pipeline_mode = #tpu.pipeline_mode<synchronous>, transform_indices = @transform_13, window_bounds = array<i64: 128, 128>}, {pipeline_mode = #tpu.pipeline_mode<synchronous>, transform_indices = @transform_14, window_bounds = array<i64: 1, 128>}, {transform_indices = @transform_15, window_bounds = array<i64: 1, 64, 128>}]} {
    %c0 = arith.constant 0 : index
    %c0_0 = arith.constant 0 : index
    %c0_1 = arith.constant 0 : index
    %0 = vector.load %arg2[%c0, %c0_0, %c0_1] : memref<1x64x128xf32, #tpu.memory_space<vmem>>, vector<1x64x128xf32>
    %1 = vector.shape_cast %0 : vector<1x64x128xf32> to vector<64x128xf32>
    %c0_2 = arith.constant 0 : index
    %c0_3 = arith.constant 0 : index
    %c0_4 = arith.constant 0 : index
    %2 = vector.load %arg3[%c0_2, %c0_3, %c0_4] : memref<1x1x128xf32, #tpu.memory_space<vmem>>, vector<1x1x128xf32>
    %3 = vector.shape_cast %2 : vector<1x1x128xf32> to vector<1x128xf32>
    %4 = vector.broadcast %3 : vector<1x128xf32> to vector<64x128xf32>
    %5 = arith.addf %1, %4 : vector<64x128xf32>
    %c0_5 = arith.constant 0 : index
    %c0_6 = arith.constant 0 : index
    %6 = vector.load %arg4[%c0_5, %c0_6] : memref<64x128xf32, #tpu.memory_space<vmem>>, vector<64x128xf32>
    %7 = arith.addf %5, %6 : vector<64x128xf32>
    %c0_7 = arith.constant 0 : index
    %c0_8 = arith.constant 0 : index
    %8 = vector.load %arg5[%c0_7, %c0_8] : memref<1x128xf32, #tpu.memory_space<vmem>>, vector<1x128xf32>
    %c0_9 = arith.constant 0 : index
    %c0_10 = arith.constant 0 : index
    %9 = vector.load %arg6[%c0_9, %c0_10] : memref<1x128xf32, #tpu.memory_space<vmem>>, vector<1x128xf32>
    %cst = arith.constant dense<0.000000e+00> : vector<64xf32>
    %10 = vector.multi_reduction <add>, %7, %cst [1] : vector<64x128xf32> to vector<64xf32>
    %11 = vector.shape_cast %10 : vector<64xf32> to vector<64x1xf32>
    %12 = arith.mulf %7, %7 : vector<64x128xf32>
    %cst_11 = arith.constant dense<0.000000e+00> : vector<64xf32>
    %13 = vector.multi_reduction <add>, %12, %cst_11 [1] : vector<64x128xf32> to vector<64xf32>
    %14 = vector.shape_cast %13 : vector<64xf32> to vector<64x1xf32>
    %cst_12 = arith.constant 3.125000e-02 : f32
    %15 = vector.broadcast %cst_12 : f32 to vector<64x1xf32>
    %16 = arith.mulf %11, %15 : vector<64x1xf32>
    %cst_13 = arith.constant 3.125000e-02 : f32
    %17 = vector.broadcast %cst_13 : f32 to vector<64x1xf32>
    %18 = arith.mulf %14, %17 : vector<64x1xf32>
    %19 = arith.mulf %16, %16 : vector<64x1xf32>
    %20 = arith.subf %18, %19 : vector<64x1xf32>
    %21 = vector.broadcast %16 : vector<64x1xf32> to vector<64x128xf32>
    %22 = arith.subf %7, %21 : vector<64x128xf32>
    %cst_14 = arith.constant 9.99999974E-6 : f32
    %23 = vector.broadcast %cst_14 : f32 to vector<64x1xf32>
    %24 = arith.addf %20, %23 : vector<64x1xf32>
    %25 = math.rsqrt %24 : vector<64x1xf32>
    %26 = vector.broadcast %25 : vector<64x1xf32> to vector<64x128xf32>
    %27 = arith.mulf %22, %26 : vector<64x128xf32>
    %28 = vector.broadcast %8 : vector<1x128xf32> to vector<64x128xf32>
    %29 = arith.mulf %27, %28 : vector<64x128xf32>
    %30 = vector.broadcast %9 : vector<1x128xf32> to vector<64x128xf32>
    %31 = arith.addf %29, %30 : vector<64x128xf32>
    %32 = arith.truncf %31 : vector<64x128xf32> to vector<64x128xbf16>
    %c0_15 = arith.constant 0 : index
    %c0_16 = arith.constant 0 : index
    %33 = vector.load %arg7[%c0_15, %c0_16] : memref<128x128xbf16, #tpu.memory_space<vmem>>, vector<128x128xbf16>
    %cst_17 = arith.constant dense<0.000000e+00> : vector<64x128xf32>
    %34 = tpu.matmul %32, %33, %cst_17 {dimension_numbers = #tpu.dot_dimension_numbers<[1], [0], [0], [1], [0, 0, 1, 1], [], []>} : vector<64x128xbf16>, vector<128x128xbf16>, vector<64x128xf32> -> vector<64x128xf32>
    %c0_18 = arith.constant 0 : index
    %c0_19 = arith.constant 0 : index
    %35 = vector.load %arg8[%c0_18, %c0_19] : memref<1x128xf32, #tpu.memory_space<vmem>>, vector<1x128xf32>
    %36 = vector.broadcast %35 : vector<1x128xf32> to vector<64x128xf32>
    %37 = arith.addf %34, %36 : vector<64x128xf32>
    %cst_20 = arith.constant 5.000000e-01 : f32
    %38 = vector.broadcast %cst_20 : f32 to vector<64x128xf32>
    %39 = arith.mulf %38, %37 : vector<64x128xf32>
    %cst_21 = arith.constant 0.707106769 : f32
    %40 = vector.broadcast %cst_21 : f32 to vector<64x128xf32>
    %41 = arith.mulf %37, %40 : vector<64x128xf32>
    %42 = math.erf %41 : vector<64x128xf32>
    %cst_22 = arith.constant 1.000000e+00 : f32
    %43 = vector.broadcast %cst_22 : f32 to vector<64x128xf32>
    %44 = arith.addf %43, %42 : vector<64x128xf32>
    %45 = arith.mulf %39, %44 : vector<64x128xf32>
    %46 = arith.truncf %45 : vector<64x128xf32> to vector<64x128xbf16>
    %c0_23 = arith.constant 0 : index
    %c0_24 = arith.constant 0 : index
    %47 = vector.load %arg9[%c0_23, %c0_24] : memref<128x128xbf16, #tpu.memory_space<vmem>>, vector<128x128xbf16>
    %cst_25 = arith.constant dense<0.000000e+00> : vector<64x128xf32>
    %48 = tpu.matmul %46, %47, %cst_25 {dimension_numbers = #tpu.dot_dimension_numbers<[1], [0], [0], [1], [0, 0, 1, 1], [], []>} : vector<64x128xbf16>, vector<128x128xbf16>, vector<64x128xf32> -> vector<64x128xf32>
    %c0_26 = arith.constant 0 : index
    %c0_27 = arith.constant 0 : index
    %49 = vector.load %arg10[%c0_26, %c0_27] : memref<1x128xf32, #tpu.memory_space<vmem>>, vector<1x128xf32>
    %50 = vector.broadcast %49 : vector<1x128xf32> to vector<64x128xf32>
    %51 = arith.addf %48, %50 : vector<64x128xf32>
    %cst_28 = arith.constant 5.000000e-01 : f32
    %52 = vector.broadcast %cst_28 : f32 to vector<64x128xf32>
    %53 = arith.mulf %52, %51 : vector<64x128xf32>
    %cst_29 = arith.constant 0.707106769 : f32
    %54 = vector.broadcast %cst_29 : f32 to vector<64x128xf32>
    %55 = arith.mulf %51, %54 : vector<64x128xf32>
    %56 = math.erf %55 : vector<64x128xf32>
    %cst_30 = arith.constant 1.000000e+00 : f32
    %57 = vector.broadcast %cst_30 : f32 to vector<64x128xf32>
    %58 = arith.addf %57, %56 : vector<64x128xf32>
    %59 = arith.mulf %53, %58 : vector<64x128xf32>
    %60 = arith.truncf %59 : vector<64x128xf32> to vector<64x128xbf16>
    %c0_31 = arith.constant 0 : index
    %c0_32 = arith.constant 0 : index
    %61 = vector.load %arg11[%c0_31, %c0_32] : memref<128x128xbf16, #tpu.memory_space<vmem>>, vector<128x128xbf16>
    %cst_33 = arith.constant dense<0.000000e+00> : vector<64x128xf32>
    %62 = tpu.matmul %60, %61, %cst_33 {dimension_numbers = #tpu.dot_dimension_numbers<[1], [0], [0], [1], [0, 0, 1, 1], [], []>} : vector<64x128xbf16>, vector<128x128xbf16>, vector<64x128xf32> -> vector<64x128xf32>
    %c0_34 = arith.constant 0 : index
    %c0_35 = arith.constant 0 : index
    %63 = vector.load %arg12[%c0_34, %c0_35] : memref<1x128xf32, #tpu.memory_space<vmem>>, vector<1x128xf32>
    %64 = vector.broadcast %63 : vector<1x128xf32> to vector<64x128xf32>
    %65 = arith.addf %62, %64 : vector<64x128xf32>
    %c0_36 = arith.constant 0 : index
    %c0_37 = arith.constant 0 : index
    %66 = vector.load %arg13[%c0_36, %c0_37] : memref<1x128xf32, #tpu.memory_space<vmem>>, vector<1x128xf32>
    %c0_38 = arith.constant 0 : index
    %c0_39 = arith.constant 0 : index
    %67 = vector.load %arg14[%c0_38, %c0_39] : memref<1x128xf32, #tpu.memory_space<vmem>>, vector<1x128xf32>
    %cst_40 = arith.constant dense<0.000000e+00> : vector<64xf32>
    %68 = vector.multi_reduction <add>, %65, %cst_40 [1] : vector<64x128xf32> to vector<64xf32>
    %69 = vector.shape_cast %68 : vector<64xf32> to vector<64x1xf32>
    %70 = arith.mulf %65, %65 : vector<64x128xf32>
    %cst_41 = arith.constant dense<0.000000e+00> : vector<64xf32>
    %71 = vector.multi_reduction <add>, %70, %cst_41 [1] : vector<64x128xf32> to vector<64xf32>
    %72 = vector.shape_cast %71 : vector<64xf32> to vector<64x1xf32>
    %cst_42 = arith.constant 3.125000e-02 : f32
    %73 = vector.broadcast %cst_42 : f32 to vector<64x1xf32>
    %74 = arith.mulf %69, %73 : vector<64x1xf32>
    %cst_43 = arith.constant 3.125000e-02 : f32
    %75 = vector.broadcast %cst_43 : f32 to vector<64x1xf32>
    %76 = arith.mulf %72, %75 : vector<64x1xf32>
    %77 = arith.mulf %74, %74 : vector<64x1xf32>
    %78 = arith.subf %76, %77 : vector<64x1xf32>
    %79 = vector.broadcast %74 : vector<64x1xf32> to vector<64x128xf32>
    %80 = arith.subf %65, %79 : vector<64x128xf32>
    %cst_44 = arith.constant 9.99999974E-6 : f32
    %81 = vector.broadcast %cst_44 : f32 to vector<64x1xf32>
    %82 = arith.addf %78, %81 : vector<64x1xf32>
    %83 = math.rsqrt %82 : vector<64x1xf32>
    %84 = vector.broadcast %83 : vector<64x1xf32> to vector<64x128xf32>
    %85 = arith.mulf %80, %84 : vector<64x128xf32>
    %86 = vector.broadcast %66 : vector<1x128xf32> to vector<64x128xf32>
    %87 = arith.mulf %85, %86 : vector<64x128xf32>
    %88 = vector.broadcast %67 : vector<1x128xf32> to vector<64x128xf32>
    %89 = arith.addf %87, %88 : vector<64x128xf32>
    %90 = arith.truncf %89 : vector<64x128xf32> to vector<64x128xbf16>
    %c0_45 = arith.constant 0 : index
    %c0_46 = arith.constant 0 : index
    %91 = vector.load %arg15[%c0_45, %c0_46] : memref<128x128xbf16, #tpu.memory_space<vmem>>, vector<128x128xbf16>
    %cst_47 = arith.constant dense<0.000000e+00> : vector<64x128xf32>
    %92 = tpu.matmul %90, %91, %cst_47 {dimension_numbers = #tpu.dot_dimension_numbers<[1], [0], [0], [1], [0, 0, 1, 1], [], []>} : vector<64x128xbf16>, vector<128x128xbf16>, vector<64x128xf32> -> vector<64x128xf32>
    %c0_48 = arith.constant 0 : index
    %c0_49 = arith.constant 0 : index
    %93 = vector.load %arg16[%c0_48, %c0_49] : memref<1x128xf32, #tpu.memory_space<vmem>>, vector<1x128xf32>
    %94 = vector.broadcast %93 : vector<1x128xf32> to vector<64x128xf32>
    %95 = arith.addf %92, %94 : vector<64x128xf32>
    %c0_50 = arith.constant 0 : index
    %c0_51 = arith.constant 0 : index
    %c0_52 = arith.constant 0 : index
    %96 = vector.load %arg17[%c0_50, %c0_51, %c0_52] : memref<1x64x128xf32, #tpu.memory_space<vmem>>, vector<1x64x128xf32>
    %97 = vector.shape_cast %96 : vector<1x64x128xf32> to vector<64x128xf32>
    %98 = vector.shape_cast %95 : vector<64x128xf32> to vector<1x64x128xf32>
    tpu.vector_store %arg17[%c0_50, %c0_51, %c0_52], %98 {strides = array<i32>} : memref<1x64x128xf32, #tpu.memory_space<vmem>>, vector<1x64x128xf32>,
    return
  }
  func.func @transform_0(%arg0: i32, %arg1: i32) -> (i32, i32, i32) {
    %c0_i32 = arith.constant 0 : i32
    %c0_i32_0 = arith.constant 0 : i32
    return %arg0, %arg1, %c0_i32 : i32, i32, i32
  }
  func.func @transform_1(%arg0: i32, %arg1: i32) -> (i32, i32, i32) {
    %c0_i32 = arith.constant 0 : i32
    %c0_i32_0 = arith.constant 0 : i32
    %c0_i32_1 = arith.constant 0 : i32
    return %arg0, %c0_i32, %c0_i32_0 : i32, i32, i32
  }
  func.func @transform_2(%arg0: i32, %arg1: i32) -> (i32, i32) {
    %c0_i32 = arith.constant 0 : i32
    %c0_i32_0 = arith.constant 0 : i32
    return %arg1, %c0_i32 : i32, i32
  }
  func.func @transform_3(%arg0: i32, %arg1: i32) -> (i32, i32) {
    %c0_i32 = arith.constant 0 : i32
    %c0_i32_0 = arith.constant 0 : i32
    %c0_i32_1 = arith.constant 0 : i32
    return %c0_i32, %c0_i32_0 : i32, i32
  }
  func.func @transform_4(%arg0: i32, %arg1: i32) -> (i32, i32) {
    %c0_i32 = arith.constant 0 : i32
    %c0_i32_0 = arith.constant 0 : i32
    %c0_i32_1 = arith.constant 0 : i32
    return %c0_i32, %c0_i32_0 : i32, i32
  }
  func.func @transform_5(%arg0: i32, %arg1: i32) -> (i32, i32) {
    %c0_i32 = arith.constant 0 : i32
    %c0_i32_0 = arith.constant 0 : i32
    %c0_i32_1 = arith.constant 0 : i32
    return %c0_i32, %c0_i32_0 : i32, i32
  }
  func.func @transform_6(%arg0: i32, %arg1: i32) -> (i32, i32) {
    %c0_i32 = arith.constant 0 : i32
    %c0_i32_0 = arith.constant 0 : i32
    %c0_i32_1 = arith.constant 0 : i32
    return %c0_i32, %c0_i32_0 : i32, i32
  }
  func.func @transform_7(%arg0: i32, %arg1: i32) -> (i32, i32) {
    %c0_i32 = arith.constant 0 : i32
    %c0_i32_0 = arith.constant 0 : i32
    %c0_i32_1 = arith.constant 0 : i32
    return %c0_i32, %c0_i32_0 : i32, i32
  }
  func.func @transform_8(%arg0: i32, %arg1: i32) -> (i32, i32) {
    %c0_i32 = arith.constant 0 : i32
    %c0_i32_0 = arith.constant 0 : i32
    %c0_i32_1 = arith.constant 0 : i32
    return %c0_i32, %c0_i32_0 : i32, i32
  }
  func.func @transform_9(%arg0: i32, %arg1: i32) -> (i32, i32) {
    %c0_i32 = arith.constant 0 : i32
    %c0_i32_0 = arith.constant 0 : i32
    %c0_i32_1 = arith.constant 0 : i32
    return %c0_i32, %c0_i32_0 : i32, i32
  }
  func.func @transform_10(%arg0: i32, %arg1: i32) -> (i32, i32) {
    %c0_i32 = arith.constant 0 : i32
    %c0_i32_0 = arith.constant 0 : i32
    %c0_i32_1 = arith.constant 0 : i32
    return %c0_i32, %c0_i32_0 : i32, i32
  }
  func.func @transform_11(%arg0: i32, %arg1: i32) -> (i32, i32) {
    %c0_i32 = arith.constant 0 : i32
    %c0_i32_0 = arith.constant 0 : i32
    %c0_i32_1 = arith.constant 0 : i32
    return %c0_i32, %c0_i32_0 : i32, i32
  }
  func.func @transform_12(%arg0: i32, %arg1: i32) -> (i32, i32) {
    %c0_i32 = arith.constant 0 : i32
    %c0_i32_0 = arith.constant 0 : i32
    %c0_i32_1 = arith.constant 0 : i32
    return %c0_i32, %c0_i32_0 : i32, i32
  }
  func.func @transform_13(%arg0: i32, %arg1: i32) -> (i32, i32) {
    %c0_i32 = arith.constant 0 : i32
    %c0_i32_0 = arith.constant 0 : i32
    %c0_i32_1 = arith.constant 0 : i32
    return %c0_i32, %c0_i32_0 : i32, i32
  }
  func.func @transform_14(%arg0: i32, %arg1: i32) -> (i32, i32) {
    %c0_i32 = arith.constant 0 : i32
    %c0_i32_0 = arith.constant 0 : i32
    %c0_i32_1 = arith.constant 0 : i32
    return %c0_i32, %c0_i32_0 : i32, i32
  }
  func.func @transform_15(%arg0: i32, %arg1: i32) -> (i32, i32, i32) {
    %c0_i32 = arith.constant 0 : i32
    %c0_i32_0 = arith.constant 0 : i32
    return %arg0, %arg1, %c0_i32 : i32, i32, i32
  }
}

</mosaic_0001>

<llo_original>
// kernel: tpu_custom_call.1
$region0: #{tpu_custom_call.1}
  #allocation0 [shape = 'u32[]', space=smem, size = 0x4, offset = 0x4, fixed_abs, tag = 'smem constant byte address 0x4 - core index']
  #allocation1 [shape = 'u32[144,128]{1,0:T(1,128)}', space=vmem, size = 0x12000, scoped, tag = 'internal scratch']
  %s0 = inlined_call_operand.hbm [shape: f32[2,64,128], index: 0, kind: input, shape index: {}]
  %s1 = inlined_call_operand.hbm [shape: f32[2,1,128], index: 1, kind: input, shape index: {}]
  %s2 = inlined_call_operand.hbm [shape: f32[64,128], index: 2, kind: input, shape index: {}]
  %s3 = inlined_call_operand.vmem [shape: f32[1,128], index: 3, kind: input, shape index: {}]
  %s4 = inlined_call_operand.vmem [shape: f32[1,128], index: 4, kind: input, shape index: {}]
  %s5 = inlined_call_operand.hbm [shape: bf16[128,128], index: 5, kind: input, shape index: {}]
  %s6 = inlined_call_operand.vmem [shape: f32[1,128], index: 6, kind: input, shape index: {}]
  %s7 = inlined_call_operand.hbm [shape: bf16[128,128], index: 7, kind: input, shape index: {}]
  %s8 = inlined_call_operand.vmem [shape: f32[1,128], index: 8, kind: input, shape index: {}]
  %s9 = inlined_call_operand.hbm [shape: bf16[128,128], index: 9, kind: input, shape index: {}]
  %s10 = inlined_call_operand.vmem [shape: f32[1,128], index: 10, kind: input, shape index: {}]
  %s11 = inlined_call_operand.vmem [shape: f32[1,128], index: 11, kind: input, shape index: {}]
  %s12 = inlined_call_operand.vmem [shape: f32[1,128], index: 12, kind: input, shape index: {}]
  %s13 = inlined_call_operand.hbm [shape: bf16[128,128], index: 13, kind: input, shape index: {}]
  %s14 = inlined_call_operand.vmem [shape: f32[1,128], index: 14, kind: input, shape index: {}]
  %s15 = inlined_call_operand.hbm [shape: f32[2,64,128], index: 15, kind: output, shape index: {}]
  %s16 = sld [smem:[#allocation0]]
  $region121: #{tpu_custom_call.1} parent=0
    _
  %s18 = ssub.s32 1, %s16
  %s19 = scalar_select 0, %s18, %s16
  $region1: #{tpu_custom_call.1} parent=0
    #allocation2 [shape = 'u8[65536]{0}', space=vmem, size = 0x10000, scoped, tag = 'input window, operand 0']
    #allocation3 [shape = 's32[2]{0}', space=sflag, size = 0x8, scoped, tag = 'scoped memory for tpu_custom_call.1']
    #allocation4 [shape = 's32[2]{0}', space=sflag, size = 0x8, scoped, tag = 'scoped memory for tpu_custom_call.1']
    #allocation5 [shape = 'u8[1024]{0}', space=vmem, size = 0x400, scoped, tag = 'input window, operand 1']
    #allocation6 [shape = 's32[2]{0}', space=sflag, size = 0x8, scoped, tag = 'scoped memory for tpu_custom_call.1']
    #allocation7 [shape = 'u8[32768]{0}', space=vmem, size = 0x8000, scoped, tag = 'input window, operand 2, single buffered']
    #allocation8 [shape = 'u8[32768]{0}', space=vmem, size = 0x8000, scoped, tag = 'input window, operand 5, single buffered']
    #allocation9 [shape = 's32[1]{0}', space=sflag, size = 0x4, scoped, tag = 'scoped memory for tpu_custom_call.1']
    #allocation10 [shape = 'u8[32768]{0}', space=vmem, size = 0x8000, scoped, tag = 'input window, operand 7, single buffered']
    #allocation11 [shape = 'u8[32768]{0}', space=vmem, size = 0x8000, scoped, tag = 'input window, operand 9, single buffered']
    #allocation12 [shape = 's32[1]{0}', space=sflag, size = 0x4, scoped, tag = 'scoped memory for tpu_custom_call.1']
    #allocation13 [shape = 'u8[32768]{0}', space=vmem, size = 0x8000, scoped, tag = 'input window, operand 13, single buffered']
    #allocation14 [shape = 'u8[65536]{0}', space=vmem, size = 0x10000, scoped, tag = 'output window, operand 0']
    %20 = vsyncpa [#allocation3], 0
    %s21 = scalar_lea.sflag [#allocation3], 1
    %22 = vsyncpa %s21, 0
    %23 = vsyncpa [#allocation6], 0
    %s24 = scalar_lea.sflag [#allocation6], 1
    %25 = vsyncpa %s24, 0
    %26 = vsyncpa [#allocation9], 0
    %27 = vsyncpa [#allocation12], 0
    %28 = vsyncpa [#allocation4], 0
    %s29 = scalar_lea.sflag [#allocation4], 1
    %30 = vsyncpa %s29, 0
    loop: start=0, step=1, limit=4
    $region2: #{tpu_custom_call.1} parent=1 // loop_pre_header
      _
    $region3: #{tpu_custom_call.1} parent=1 // loop_header
      %s32 = sphi 0, %s36
      %p33 = scmp.ge.s32.totalorder %s32, 4
      %s39 = sphi 0, %s51
      %s40 = sphi 0, %s47
      %s41 = sphi 0, %s39
      %s42 = sphi 0, %s40
      %s43 = sphi 0, %s41
      %s44 = sphi 0, %s42
      %s56 = sphi 0, %s58
      %s59 = sphi 0, %s56
      %s60 = sphi 0, %s59
      %s76 = sphi 0, %s60
      %s82 = sphi 0, %s84
      %s85 = sphi 0, %s82
      %s86 = sphi 0, %s85
      %s102 = sphi 0, %s86
      %s108 = sphi 0, %s110
      %s111 = sphi 0, %s108
      %s112 = sphi 0, %s111
      %s128 = sphi 0, %s112
      %s132 = sphi 0, %s132
      %s134 = sphi 0, %s132
      %s135 = sphi 0, %s134
      %s149 = sphi 0, %s135
      %s153 = sphi 0, %s153
      %s155 = sphi 0, %s153
      %s156 = sphi 0, %s155
      %s170 = sphi 0, %s156
      %s174 = sphi 0, %s174
      %s176 = sphi 0, %s174
      %s177 = sphi 0, %s176
      %s191 = sphi 0, %s177
      %s195 = sphi 0, %s195
      %s197 = sphi 0, %s195
      %s198 = sphi 0, %s197
      %s212 = sphi 0, %s198
      %s216 = sphi 0, %s216
      %s218 = sphi 0, %s216
      %s219 = sphi 0, %s218
      %s233 = sphi 0, %s219
      %s237 = sphi 0, %s237
      %s239 = sphi 0, %s237
      %s240 = sphi 0, %s239
      %s254 = sphi 0, %s240
      %s258 = sphi 0, %s258
      %s260 = sphi 0, %s258
      %s261 = sphi 0, %s260
      %s275 = sphi 0, %s261
      %s279 = sphi 0, %s279
      %s281 = sphi 0, %s279
      %s282 = sphi 0, %s281
      %s296 = sphi 0, %s282
      %s300 = sphi 0, %s300
      %s302 = sphi 0, %s300
      %s303 = sphi 0, %s302
      %s317 = sphi 0, %s303
      %s321 = sphi 0, %s321
      %s323 = sphi 0, %s321
      %s324 = sphi 0, %s323
      %s338 = sphi 0, %s324
      %s342 = sphi 0, %s342
      %s344 = sphi 0, %s342
      %s345 = sphi 0, %s344
      %s359 = sphi 0, %s345
      %s363 = sphi 0, %s363
      %s365 = sphi 0, %s363
      %s366 = sphi 0, %s365
      %s380 = sphi 0, %s366
      %s388 = sphi 0, %s390
      %s391 = sphi 0, %s388
      %s392 = sphi 0, %s391
      %s408 = sphi 0, %s392
    $region4: #{tpu_custom_call.1} parent=1 // loop_header_branch
      %35 = sbr.rel (%p33) target = $region8
    $region5: #{tpu_custom_call.1} parent=1 // loop_body
      %s37 = ssub.s32 %s32, 1
      %s38 = ssub.s32 %s32, 2
      %s45 = sadd.s32 1, %s40
      %p46 = scmp.ge.s32.totalorder %s45, 1
      %s47 = scalar_select %p46, 0, %s45
      %s48 = sadd.s32 1, %s39
      %s49 = scalar_select %p46, %s48, %s39
      %p50 = scmp.ge.s32.totalorder %s49, 2
      %s51 = scalar_select %p50, 0, %s49
      %s52 = ssub.s32 %s39, %s51
      %s53 = ssub.s32 %s40, %s47
      %s54 = sor.u32 %s52, %s53
      %p55 = scmp.eq.s32.totalorder %s54, 0
      %s57 = sadd.s32 %s56, 1
      %s58 = scalar_select %p55, %s56, %s57
      %p61 = pneg %p55
      %p62 = scmp.eq.s32.totalorder %s32, 1
      %p63 = por %p61, %p62
      %p64 = scmp.ne.s32.totalorder %s56, %s59
      %p65 = scmp.eq.s32.totalorder %s32, 0
      %p66 = por %p64, %p65
      %p67 = scmp.ne.s32.totalorder %s56, %s59
      %p68 = scmp.eq.s32.totalorder %s37, 1
      %p69 = por %p67, %p68
      %p70 = scmp.ne.s32.totalorder %s59, %s60
      %p71 = scmp.eq.s32.totalorder %s37, 0
      %p72 = por %p70, %p71
      %p73 = scmp.ne.s32.totalorder %s59, %s60
      %p74 = scmp.eq.s32.totalorder %s38, 1
      %p75 = por %p73, %p74
      %p77 = scmp.ne.s32.totalorder %s60, %s76
      %p78 = scmp.eq.s32.totalorder %s38, 0
      %p79 = por %p77, %p78
      %s80 = ssub.s32 %s39, %s51
      %p81 = scmp.eq.s32.totalorder %s80, 0
      %s83 = sadd.s32 %s82, 1
      %s84 = scalar_select %p81, %s82, %s83
      %p87 = pneg %p81
      %p88 = scmp.eq.s32.totalorder %s32, 1
      %p89 = por %p87, %p88
      %p90 = scmp.ne.s32.totalorder %s82, %s85
      %p91 = scmp.eq.s32.totalorder %s32, 0
      %p92 = por %p90, %p91
      %p93 = scmp.ne.s32.totalorder %s82, %s85
      %p94 = scmp.eq.s32.totalorder %s37, 1
      %p95 = por %p93, %p94
      %p96 = scmp.ne.s32.totalorder %s85, %s86
      %p97 = scmp.eq.s32.totalorder %s37, 0
      %p98 = por %p96, %p97
      %p99 = scmp.ne.s32.totalorder %s85, %s86
      %p100 = scmp.eq.s32.totalorder %s38, 1
      %p101 = por %p99, %p100
      %p103 = scmp.ne.s32.totalorder %s86, %s102
      %p104 = scmp.eq.s32.totalorder %s38, 0
      %p105 = por %p103, %p104
      %s106 = ssub.s32 %s40, %s47
      %p107 = scmp.eq.s32.totalorder %s106, 0
      %s109 = sadd.s32 %s108, 1
      %s110 = scalar_select %p107, %s108, %s109
      %p113 = pneg %p107
      %p114 = scmp.eq.s32.totalorder %s32, 1
      %p115 = por %p113, %p114
      %p116 = scmp.ne.s32.totalorder %s108, %s111
      %p117 = scmp.eq.s32.totalorder %s32, 0
      %p118 = por %p116, %p117
      %p119 = scmp.ne.s32.totalorder %s108, %s111
      %p120 = scmp.eq.s32.totalorder %s37, 1
      %p121 = por %p119, %p120
      %p122 = scmp.ne.s32.totalorder %s111, %s112
      %p123 = scmp.eq.s32.totalorder %s37, 0
      %p124 = por %p122, %p123
      %p125 = scmp.ne.s32.totalorder %s111, %s112
      %p126 = scmp.eq.s32.totalorder %s38, 1
      %p127 = por %p125, %p126
      %p129 = scmp.ne.s32.totalorder %s112, %s128
      %p130 = scmp.eq.s32.totalorder %s38, 0
      %p131 = por %p129, %p130
      %s133 = sadd.s32 %s132, 1
      %p136 = scmp.eq.s32.totalorder %s32, 1
      %p137 = scmp.ne.s32.totalorder %s132, %s134
      %p138 = scmp.eq.s32.totalorder %s32, 0
      %p139 = por %p137, %p138
      %p140 = scmp.ne.s32.totalorder %s132, %s134
      %p141 = scmp.eq.s32.totalorder %s37, 1
      %p142 = por %p140, %p141
      %p143 = scmp.ne.s32.totalorder %s134, %s135
      %p144 = scmp.eq.s32.totalorder %s37, 0
      %p145 = por %p143, %p144
      %p146 = scmp.ne.s32.totalorder %s134, %s135
      %p147 = scmp.eq.s32.totalorder %s38, 1
      %p148 = por %p146, %p147
      %p150 = scmp.ne.s32.totalorder %s135, %s149
      %p151 = scmp.eq.s32.totalorder %s38, 0
      %p152 = por %p150, %p151
      %s154 = sadd.s32 %s153, 1
      %p157 = scmp.eq.s32.totalorder %s32, 1
      %p158 = scmp.ne.s32.totalorder %s153, %s155
      %p159 = scmp.eq.s32.totalorder %s32, 0
      %p160 = por %p158, %p159
      %p161 = scmp.ne.s32.totalorder %s153, %s155
      %p162 = scmp.eq.s32.totalorder %s37, 1
      %p163 = por %p161, %p162
      %p164 = scmp.ne.s32.totalorder %s155, %s156
      %p165 = scmp.eq.s32.totalorder %s37, 0
      %p166 = por %p164, %p165
      %p167 = scmp.ne.s32.totalorder %s155, %s156
      %p168 = scmp.eq.s32.totalorder %s38, 1
      %p169 = por %p167, %p168
      %p171 = scmp.ne.s32.totalorder %s156, %s170
      %p172 = scmp.eq.s32.totalorder %s38, 0
      %p173 = por %p171, %p172
      %s175 = sadd.s32 %s174, 1
      %p178 = scmp.eq.s32.totalorder %s32, 1
      %p179 = scmp.ne.s32.totalorder %s174, %s176
      %p180 = scmp.eq.s32.totalorder %s32, 0
      %p181 = por %p179, %p180
      %p182 = scmp.ne.s32.totalorder %s174, %s176
      %p183 = scmp.eq.s32.totalorder %s37, 1
      %p184 = por %p182, %p183
      %p185 = scmp.ne.s32.totalorder %s176, %s177
      %p186 = scmp.eq.s32.totalorder %s37, 0
      %p187 = por %p185, %p186
      %p188 = scmp.ne.s32.totalorder %s176, %s177
      %p189 = scmp.eq.s32.totalorder %s38, 1
      %p190 = por %p188, %p189
      %p192 = scmp.ne.s32.totalorder %s177, %s191
      %p193 = scmp.eq.s32.totalorder %s38, 0
      %p194 = por %p192, %p193
      %s196 = sadd.s32 %s195, 1
      %p199 = scmp.eq.s32.totalorder %s32, 1
      %p200 = scmp.ne.s32.totalorder %s195, %s197
      %p201 = scmp.eq.s32.totalorder %s32, 0
      %p202 = por %p200, %p201
      %p203 = scmp.ne.s32.totalorder %s195, %s197
      %p204 = scmp.eq.s32.totalorder %s37, 1
      %p205 = por %p203, %p204
      %p206 = scmp.ne.s32.totalorder %s197, %s198
      %p207 = scmp.eq.s32.totalorder %s37, 0
      %p208 = por %p206, %p207
      %p209 = scmp.ne.s32.totalorder %s197, %s198
      %p210 = scmp.eq.s32.totalorder %s38, 1
      %p211 = por %p209, %p210
      %p213 = scmp.ne.s32.totalorder %s198, %s212
      %p214 = scmp.eq.s32.totalorder %s38, 0
      %p215 = por %p213, %p214
      %s217 = sadd.s32 %s216, 1
      %p220 = scmp.eq.s32.totalorder %s32, 1
      %p221 = scmp.ne.s32.totalorder %s216, %s218
      %p222 = scmp.eq.s32.totalorder %s32, 0
      %p223 = por %p221, %p222
      %p224 = scmp.ne.s32.totalorder %s216, %s218
      %p225 = scmp.eq.s32.totalorder %s37, 1
      %p226 = por %p224, %p225
      %p227 = scmp.ne.s32.totalorder %s218, %s219
      %p228 = scmp.eq.s32.totalorder %s37, 0
      %p229 = por %p227, %p228
      %p230 = scmp.ne.s32.totalorder %s218, %s219
      %p231 = scmp.eq.s32.totalorder %s38, 1
      %p232 = por %p230, %p231
      %p234 = scmp.ne.s32.totalorder %s219, %s233
      %p235 = scmp.eq.s32.totalorder %s38, 0
      %p236 = por %p234, %p235
      %s238 = sadd.s32 %s237, 1
      %p241 = scmp.eq.s32.totalorder %s32, 1
      %p242 = scmp.ne.s32.totalorder %s237, %s239
      %p243 = scmp.eq.s32.totalorder %s32, 0
      %p244 = por %p242, %p243
      %p245 = scmp.ne.s32.totalorder %s237, %s239
      %p246 = scmp.eq.s32.totalorder %s37, 1
      %p247 = por %p245, %p246
      %p248 = scmp.ne.s32.totalorder %s239, %s240
      %p249 = scmp.eq.s32.totalorder %s37, 0
      %p250 = por %p248, %p249
      %p251 = scmp.ne.s32.totalorder %s239, %s240
      %p252 = scmp.eq.s32.totalorder %s38, 1
      %p253 = por %p251, %p252
      %p255 = scmp.ne.s32.totalorder %s240, %s254
      %p256 = scmp.eq.s32.totalorder %s38, 0
      %p257 = por %p255, %p256
      %s259 = sadd.s32 %s258, 1
      %p262 = scmp.eq.s32.totalorder %s32, 1
      %p263 = scmp.ne.s32.totalorder %s258, %s260
      %p264 = scmp.eq.s32.totalorder %s32, 0
      %p265 = por %p263, %p264
      %p266 = scmp.ne.s32.totalorder %s258, %s260
      %p267 = scmp.eq.s32.totalorder %s37, 1
      %p268 = por %p266, %p267
      %p269 = scmp.ne.s32.totalorder %s260, %s261
      %p270 = scmp.eq.s32.totalorder %s37, 0
      %p271 = por %p269, %p270
      %p272 = scmp.ne.s32.totalorder %s260, %s261
      %p273 = scmp.eq.s32.totalorder %s38, 1
      %p274 = por %p272, %p273
      %p276 = scmp.ne.s32.totalorder %s261, %s275
      %p277 = scmp.eq.s32.totalorder %s38, 0
      %p278 = por %p276, %p277
      %s280 = sadd.s32 %s279, 1
      %p283 = scmp.eq.s32.totalorder %s32, 1
      %p284 = scmp.ne.s32.totalorder %s279, %s281
      %p285 = scmp.eq.s32.totalorder %s32, 0
      %p286 = por %p284, %p285
      %p287 = scmp.ne.s32.totalorder %s279, %s281
      %p288 = scmp.eq.s32.totalorder %s37, 1
      %p289 = por %p287, %p288
      %p290 = scmp.ne.s32.totalorder %s281, %s282
      %p291 = scmp.eq.s32.totalorder %s37, 0
      %p292 = por %p290, %p291
      %p293 = scmp.ne.s32.totalorder %s281, %s282
      %p294 = scmp.eq.s32.totalorder %s38, 1
      %p295 = por %p293, %p294
      %p297 = scmp.ne.s32.totalorder %s282, %s296
      %p298 = scmp.eq.s32.totalorder %s38, 0
      %p299 = por %p297, %p298
      %s301 = sadd.s32 %s300, 1
      %p304 = scmp.eq.s32.totalorder %s32, 1
      %p305 = scmp.ne.s32.totalorder %s300, %s302
      %p306 = scmp.eq.s32.totalorder %s32, 0
      %p307 = por %p305, %p306
      %p308 = scmp.ne.s32.totalorder %s300, %s302
      %p309 = scmp.eq.s32.totalorder %s37, 1
      %p310 = por %p308, %p309
      %p311 = scmp.ne.s32.totalorder %s302, %s303
      %p312 = scmp.eq.s32.totalorder %s37, 0
      %p313 = por %p311, %p312
      %p314 = scmp.ne.s32.totalorder %s302, %s303
      %p315 = scmp.eq.s32.totalorder %s38, 1
      %p316 = por %p314, %p315
      %p318 = scmp.ne.s32.totalorder %s303, %s317
      %p319 = scmp.eq.s32.totalorder %s38, 0
      %p320 = por %p318, %p319
      %s322 = sadd.s32 %s321, 1
      %p325 = scmp.eq.s32.totalorder %s32, 1
      %p326 = scmp.ne.s32.totalorder %s321, %s323
      %p327 = scmp.eq.s32.totalorder %s32, 0
      %p328 = por %p326, %p327
      %p329 = scmp.ne.s32.totalorder %s321, %s323
      %p330 = scmp.eq.s32.totalorder %s37, 1
      %p331 = por %p329, %p330
      %p332 = scmp.ne.s32.totalorder %s323, %s324
      %p333 = scmp.eq.s32.totalorder %s37, 0
      %p334 = por %p332, %p333
      %p335 = scmp.ne.s32.totalorder %s323, %s324
      %p336 = scmp.eq.s32.totalorder %s38, 1
      %p337 = por %p335, %p336
      %p339 = scmp.ne.s32.totalorder %s324, %s338
      %p340 = scmp.eq.s32.totalorder %s38, 0
      %p341 = por %p339, %p340
      %s343 = sadd.s32 %s342, 1
      %p346 = scmp.eq.s32.totalorder %s32, 1
      %p347 = scmp.ne.s32.totalorder %s342, %s344
      %p348 = scmp.eq.s32.totalorder %s32, 0
      %p349 = por %p347, %p348
      %p350 = scmp.ne.s32.totalorder %s342, %s344
      %p351 = scmp.eq.s32.totalorder %s37, 1
      %p352 = por %p350, %p351
      %p353 = scmp.ne.s32.totalorder %s344, %s345
      %p354 = scmp.eq.s32.totalorder %s37, 0
      %p355 = por %p353, %p354
      %p356 = scmp.ne.s32.totalorder %s344, %s345
      %p357 = scmp.eq.s32.totalorder %s38, 1
      %p358 = por %p356, %p357
      %p360 = scmp.ne.s32.totalorder %s345, %s359
      %p361 = scmp.eq.s32.totalorder %s38, 0
      %p362 = por %p360, %p361
      %s364 = sadd.s32 %s363, 1
      %p367 = scmp.eq.s32.totalorder %s32, 1
      %p368 = scmp.ne.s32.totalorder %s363, %s365
      %p369 = scmp.eq.s32.totalorder %s32, 0
      %p370 = por %p368, %p369
      %p371 = scmp.ne.s32.totalorder %s363, %s365
      %p372 = scmp.eq.s32.totalorder %s37, 1
      %p373 = por %p371, %p372
      %p374 = scmp.ne.s32.totalorder %s365, %s366
      %p375 = scmp.eq.s32.totalorder %s37, 0
      %p376 = por %p374, %p375
      %p377 = scmp.ne.s32.totalorder %s365, %s366
      %p378 = scmp.eq.s32.totalorder %s38, 1
      %p379 = por %p377, %p378
      %p381 = scmp.ne.s32.totalorder %s366, %s380
      %p382 = scmp.eq.s32.totalorder %s38, 0
      %p383 = por %p381, %p382
      %s384 = ssub.s32 %s39, %s51
      %s385 = ssub.s32 %s40, %s47
      %s386 = sor.u32 %s384, %s385
      %p387 = scmp.eq.s32.totalorder %s386, 0
      %s389 = sadd.s32 %s388, 1
      %s390 = scalar_select %p387, %s388, %s389
      %p393 = pneg %p387
      %p394 = scmp.eq.s32.totalorder %s32, 1
      %p395 = por %p393, %p394
      %p396 = scmp.ne.s32.totalorder %s388, %s391
      %p397 = scmp.eq.s32.totalorder %s32, 0
      %p398 = por %p396, %p397
      %p399 = scmp.ne.s32.totalorder %s388, %s391
      %p400 = scmp.eq.s32.totalorder %s37, 1
      %p401 = por %p399, %p400
      %p402 = scmp.ne.s32.totalorder %s391, %s392
      %p403 = scmp.eq.s32.totalorder %s37, 0
      %p404 = por %p402, %p403
      %p405 = scmp.ne.s32.totalorder %s391, %s392
      %p406 = scmp.eq.s32.totalorder %s38, 1
      %p407 = por %p405, %p406
      %p409 = scmp.ne.s32.totalorder %s392, %s408
      %p410 = scmp.eq.s32.totalorder %s38, 0
      %p411 = por %p409, %p410
      %p412 = scmp.le.s32.totalorder 1, %s32
      %p413 = scmp.lt.s32.totalorder %s32, 3
      %p414 = pnand %p412, %p413
      %p415 = pneg %p414
      // Predicated region
      $region9: #{tpu_custom_call.1} parent=5 // pred_check
        _
      $region10: #{tpu_custom_call.1} parent=5 // pred_check_branch
        %417 = sbr.rel (%p414) target = $region12
      $region11: #{tpu_custom_call.1} parent=5 // pred_region
        %s418 = ssub.s32 %s32, 1
        // Predicated region
        $region13: #{tpu_custom_call.1} parent=11 // pred_check
          %p419 = pneg %p124
        $region14: #{tpu_custom_call.1} parent=11 // pred_check_branch
          %421 = sbr.rel (%p419) target = $region16
        $region15: #{tpu_custom_call.1} parent=11 // pred_region
          %s422 = smul.u32 8, %s42
          %s424 = ssub.s32 1024, 1024
          %425 = vsyncadd [#allocation6], %s424
          %s426 = smul.addr %s422, 128
          %s427 = scalar_lea.hbm %s2, %s426
          %s428 = sshll.u32 [#allocation7], 4
          %s429 = int_to_ptr.vmem [resolvable:$true] %s428
          %434 = dma.hbm_to_vmem [thread:$0]  %s427, 1024, %s429, [#allocation6], 128, 128, 8
        $region16: #{tpu_custom_call.1} parent=11 // pred_fallthru
          _
        // Predicated region
        $region17: #{tpu_custom_call.1} parent=11 // pred_check
          %p435 = pneg %p145
        $region18: #{tpu_custom_call.1} parent=11 // pred_check_branch
          %437 = sbr.rel (%p435) target = $region20
        $region19: #{tpu_custom_call.1} parent=11 // pred_region
          _
        $region20: #{tpu_custom_call.1} parent=11 // pred_fallthru
          _
        // Predicated region
        $region21: #{tpu_custom_call.1} parent=11 // pred_check
          %p438 = pneg %p166
        $region22: #{tpu_custom_call.1} parent=11 // pred_check_branch
          %440 = sbr.rel (%p438) target = $region24
        $region23: #{tpu_custom_call.1} parent=11 // pred_region
          _
        $region24: #{tpu_custom_call.1} parent=11 // pred_fallthru
          _
        // Predicated region
        $region25: #{tpu_custom_call.1} parent=11 // pred_check
          %p441 = pneg %p187
        $region26: #{tpu_custom_call.1} parent=11 // pred_check_branch
          %443 = sbr.rel (%p441) target = $region28
        $region27: #{tpu_custom_call.1} parent=11 // pred_region
          %s445 = ssub.s32 1024, 1024
          %446 = vsyncadd [#allocation9], %s445
          %s447 = sshll.u32 [#allocation8], 4
          %s448 = int_to_ptr.vmem [resolvable:$true] %s447
          %453 = dma.hbm_to_vmem [thread:$0]  %s5, 1024, %s448, [#allocation9], 64, 64, 4
        $region28: #{tpu_custom_call.1} parent=11 // pred_fallthru
          _
        // Predicated region
        $region29: #{tpu_custom_call.1} parent=11 // pred_check
          %p454 = pneg %p208
        $region30: #{tpu_custom_call.1} parent=11 // pred_check_branch
          %456 = sbr.rel (%p454) target = $region32
        $region31: #{tpu_custom_call.1} parent=11 // pred_region
          _
        $region32: #{tpu_custom_call.1} parent=11 // pred_fallthru
          _
        // Predicated region
        $region33: #{tpu_custom_call.1} parent=11 // pred_check
          %p457 = pneg %p229
        $region34: #{tpu_custom_call.1} parent=11 // pred_check_branch
          %459 = sbr.rel (%p457) target = $region36
        $region35: #{tpu_custom_call.1} parent=11 // pred_region
          %s461 = ssub.s32 1024, 1024
          %462 = vsyncadd [#allocation9], %s461
          %s463 = sshll.u32 [#allocation10], 4
          %s464 = int_to_ptr.vmem [resolvable:$true] %s463
          %469 = dma.hbm_to_vmem [thread:$0]  %s7, 1024, %s464, [#allocation9], 64, 64, 4
        $region36: #{tpu_custom_call.1} parent=11 // pred_fallthru
          _
        // Predicated region
        $region37: #{tpu_custom_call.1} parent=11 // pred_check
          %p470 = pneg %p250
        $region38: #{tpu_custom_call.1} parent=11 // pred_check_branch
          %472 = sbr.rel (%p470) target = $region40
        $region39: #{tpu_custom_call.1} parent=11 // pred_region
          _
        $region40: #{tpu_custom_call.1} parent=11 // pred_fallthru
          _
        // Predicated region
        $region41: #{tpu_custom_call.1} parent=11 // pred_check
          %p473 = pneg %p271
        $region42: #{tpu_custom_call.1} parent=11 // pred_check_branch
          %475 = sbr.rel (%p473) target = $region44
        $region43: #{tpu_custom_call.1} parent=11 // pred_region
          %s477 = ssub.s32 1024, 1024
          %478 = vsyncadd [#allocation12], %s477
          %s479 = sshll.u32 [#allocation11], 4
          %s480 = int_to_ptr.vmem [resolvable:$true] %s479
          %485 = dma.hbm_to_vmem [thread:$0]  %s9, 1024, %s480, [#allocation12], 64, 64, 4
        $region44: #{tpu_custom_call.1} parent=11 // pred_fallthru
          _
        // Predicated region
        $region45: #{tpu_custom_call.1} parent=11 // pred_check
          %p486 = pneg %p292
        $region46: #{tpu_custom_call.1} parent=11 // pred_check_branch
          %488 = sbr.rel (%p486) target = $region48
        $region47: #{tpu_custom_call.1} parent=11 // pred_region
          _
        $region48: #{tpu_custom_call.1} parent=11 // pred_fallthru
          _
        // Predicated region
        $region49: #{tpu_custom_call.1} parent=11 // pred_check
          %p489 = pneg %p313
        $region50: #{tpu_custom_call.1} parent=11 // pred_check_branch
          %491 = sbr.rel (%p489) target = $region52
        $region51: #{tpu_custom_call.1} parent=11 // pred_region
          _
        $region52: #{tpu_custom_call.1} parent=11 // pred_fallthru
          _
        // Predicated region
        $region53: #{tpu_custom_call.1} parent=11 // pred_check
          %p492 = pneg %p334
        $region54: #{tpu_custom_call.1} parent=11 // pred_check_branch
          %494 = sbr.rel (%p492) target = $region56
        $region55: #{tpu_custom_call.1} parent=11 // pred_region
          _
        $region56: #{tpu_custom_call.1} parent=11 // pred_fallthru
          _
        // Predicated region
        $region57: #{tpu_custom_call.1} parent=11 // pred_check
          %p495 = pneg %p355
        $region58: #{tpu_custom_call.1} parent=11 // pred_check_branch
          %497 = sbr.rel (%p495) target = $region60
        $region59: #{tpu_custom_call.1} parent=11 // pred_region
          %s499 = ssub.s32 1024, 1024
          %500 = vsyncadd [#allocation12], %s499
          %s501 = sshll.u32 [#allocation13], 4
          %s502 = int_to_ptr.vmem [resolvable:$true] %s501
          %507 = dma.hbm_to_vmem [thread:$0]  %s13, 1024, %s502, [#allocation12], 64, 64, 4
        $region60: #{tpu_custom_call.1} parent=11 // pred_fallthru
          _
        // Predicated region
        $region61: #{tpu_custom_call.1} parent=11 // pred_check
          %p508 = pneg %p376
        $region62: #{tpu_custom_call.1} parent=11 // pred_check_branch
          %510 = sbr.rel (%p508) target = $region64
        $region63: #{tpu_custom_call.1} parent=11 // pred_region
          _
        $region64: #{tpu_custom_call.1} parent=11 // pred_fallthru
          _
      $region12: #{tpu_custom_call.1} parent=5 // pred_fallthru
        _
      %p511 = scmp.lt.s32.totalorder %s32, 2
      // Predicated region
      $region65: #{tpu_custom_call.1} parent=5 // pred_check
        %p512 = pneg %p511
      $region66: #{tpu_custom_call.1} parent=5 // pred_check_branch
        %514 = sbr.rel (%p512) target = $region68
      $region67: #{tpu_custom_call.1} parent=5 // pred_region
        // Predicated region
        $region69: #{tpu_custom_call.1} parent=67 // pred_check
          %p515 = pneg %p66
        $region70: #{tpu_custom_call.1} parent=67 // pred_check_branch
          %517 = sbr.rel (%p515) target = $region72
        $region71: #{tpu_custom_call.1} parent=67 // pred_region
          %s518 = sand.u32 %s56, 1
          %s519 = scalar_lea.sflag [#allocation3], %s518
          %s520 = sand.u32 %s56, 1
          %s521 = smul.addr %s520, 64
          %s522 = scalar_lea.vmem [#allocation2], %s521
          %s523 = smul.u32 8, %s40
          %s525 = ssub.s32 1024, 1024
          %526 = vsyncadd %s519, %s525
          %s527 = smul.addr %s39, 8
          %s528 = sadd.s32 %s523, %s527
          %s529 = smul.addr %s528, 128
          %s530 = scalar_lea.hbm %s0, %s529
          %s531 = sshll.u32 %s522, 4
          %s532 = int_to_ptr.vmem [resolvable:$true] %s531
          %537 = dma.hbm_to_vmem [thread:$0]  %s530, 1024, %s532, %s519, 128, 128, 8
        $region72: #{tpu_custom_call.1} parent=67 // pred_fallthru
          _
        // Predicated region
        $region73: #{tpu_custom_call.1} parent=67 // pred_check
          %p538 = pneg %p92
        $region74: #{tpu_custom_call.1} parent=67 // pred_check_branch
          %540 = sbr.rel (%p538) target = $region76
        $region75: #{tpu_custom_call.1} parent=67 // pred_region
          %s541 = sand.u32 %s32, 1
          %s542 = scalar_lea.sflag [#allocation6], %s541
          %s543 = sand.u32 %s82, 1
          %s544 = scalar_lea.vmem [#allocation5], %s543
          %s546 = ssub.s32 16, 16
          %547 = vsyncadd %s542, %s546
          %s548 = smul.addr %s39, 16
          %s549 = scalar_lea.hbm %s1, %s548
          %s551 = sshll.u32 %s544, 4
          %s552 = int_to_ptr.vmem [resolvable:$true] %s551
          %554 = dma.hbm_to_vmem [thread:$0]  %s549, 16, %s552, %s542
        $region76: #{tpu_custom_call.1} parent=67 // pred_fallthru
          _
      $region68: #{tpu_custom_call.1} parent=5 // pred_fallthru
        _
      %p555 = scmp.le.s32.totalorder 1, %s32
      %p556 = scmp.lt.s32.totalorder %s32, 3
      %p557 = pnand %p555, %p556
      %p558 = pneg %p557
      // Predicated region
      $region77: #{tpu_custom_call.1} parent=5 // pred_check
        _
      $region78: #{tpu_custom_call.1} parent=5 // pred_check_branch
        %560 = sbr.rel (%p557) target = $region80
      $region79: #{tpu_custom_call.1} parent=5 // pred_region
        %s561 = ssub.s32 %s32, 1
        %s562 = sand.u32 %s59, 1
        %s563 = scalar_lea.sflag [#allocation3], %s562
        %s564 = sand.u32 %s59, 1
        %s565 = smul.addr %s564, 64
        %s566 = scalar_lea.vmem [#allocation2], %s565
        // Predicated region
        $region81: #{tpu_custom_call.1} parent=79 // pred_check
          %p567 = pneg %p72
        $region82: #{tpu_custom_call.1} parent=79 // pred_check_branch
          %569 = sbr.rel (%p567) target = $region84
        $region83: #{tpu_custom_call.1} parent=79 // pred_region
          %570 = dma.done %s563, 1024
        $region84: #{tpu_custom_call.1} parent=79 // pred_fallthru
          _
        %s571 = sand.u32 %s37, 1
        %s572 = scalar_lea.sflag [#allocation6], %s571
        %s573 = sand.u32 %s85, 1
        %s574 = scalar_lea.vmem [#allocation5], %s573
        // Predicated region
        $region85: #{tpu_custom_call.1} parent=79 // pred_check
          %p575 = pneg %p98
        $region86: #{tpu_custom_call.1} parent=79 // pred_check_branch
          %577 = sbr.rel (%p575) target = $region88
        $region87: #{tpu_custom_call.1} parent=79 // pred_region
          %578 = dma.done %s572, 16
        $region88: #{tpu_custom_call.1} parent=79 // pred_fallthru
          _
        // Predicated region
        $region89: #{tpu_custom_call.1} parent=79 // pred_check
          %p579 = pneg %p124
        $region90: #{tpu_custom_call.1} parent=79 // pred_check_branch
          %581 = sbr.rel (%p579) target = $region92
        $region91: #{tpu_custom_call.1} parent=79 // pred_region
          %582 = dma.done [#allocation6], 1024
        $region92: #{tpu_custom_call.1} parent=79 // pred_fallthru
          _
        // Predicated region
        $region93: #{tpu_custom_call.1} parent=79 // pred_check
          %p583 = pneg %p187
        $region94: #{tpu_custom_call.1} parent=79 // pred_check_branch
          %585 = sbr.rel (%p583) target = $region96
        $region95: #{tpu_custom_call.1} parent=79 // pred_region
          %586 = dma.done [#allocation9], 1024
        $region96: #{tpu_custom_call.1} parent=79 // pred_fallthru
          _
        // Predicated region
        $region97: #{tpu_custom_call.1} parent=79 // pred_check
          %p587 = pneg %p229
        $region98: #{tpu_custom_call.1} parent=79 // pred_check_branch
          %589 = sbr.rel (%p587) target = $region100
        $region99: #{tpu_custom_call.1} parent=79 // pred_region
          %590 = dma.done [#allocation9], 1024
        $region100: #{tpu_custom_call.1} parent=79 // pred_fallthru
          _
        // Predicated region
        $region101: #{tpu_custom_call.1} parent=79 // pred_check
          %p591 = pneg %p271
        $region102: #{tpu_custom_call.1} parent=79 // pred_check_branch
          %593 = sbr.rel (%p591) target = $region104
        $region103: #{tpu_custom_call.1} parent=79 // pred_region
          %594 = dma.done [#allocation12], 1024
        $region104: #{tpu_custom_call.1} parent=79 // pred_fallthru
          _
        // Predicated region
        $region105: #{tpu_custom_call.1} parent=79 // pred_check
          %p595 = pneg %p355
        $region106: #{tpu_custom_call.1} parent=79 // pred_check_branch
          %597 = sbr.rel (%p595) target = $region108
        $region107: #{tpu_custom_call.1} parent=79 // pred_region
          %598 = dma.done [#allocation12], 1024
        $region108: #{tpu_custom_call.1} parent=79 // pred_fallthru
          _
        %s599 = sand.u32 %s59, 1
        %s600 = scalar_lea.sflag [#allocation3], %s599
        %s601 = sand.u32 %s59, 1
        %s602 = smul.addr %s601, 64
        %s603 = scalar_lea.vmem [#allocation2], %s602
        %p604 = pneg %p72
        %p605 = pneg %p69
        %s606 = sand.u32 %s37, 1
        %s607 = scalar_lea.sflag [#allocation6], %s606
        %s608 = sand.u32 %s85, 1
        %s609 = scalar_lea.vmem [#allocation5], %s608
        %p610 = pneg %p98
        %p611 = pneg %p95
        %p612 = pneg %p124
        %p613 = pneg %p121
        %p614 = pneg %p145
        %p615 = pneg %p142
        %p616 = pneg %p166
        %p617 = pneg %p163
        %p618 = pneg %p187
        %p619 = pneg %p184
        %p620 = pneg %p208
        %p621 = pneg %p205
        %p622 = pneg %p229
        %p623 = pneg %p226
        %p624 = pneg %p250
        %p625 = pneg %p247
        %p626 = pneg %p271
        %p627 = pneg %p268
        %p628 = pneg %p292
        %p629 = pneg %p289
        %p630 = pneg %p313
        %p631 = pneg %p310
        %p632 = pneg %p334
        %p633 = pneg %p331
        %p634 = pneg %p355
        %p635 = pneg %p352
        %p636 = pneg %p376
        %p637 = pneg %p373
        %p638 = pneg %p404
        %p639 = pneg %p401
        %s640 = sand.u32 %s391, 1
        %s641 = scalar_lea.sflag [#allocation4], %s640
        %s642 = sand.u32 %s391, 1
        %s643 = smul.addr %s642, 64
        %s644 = scalar_lea.vmem [#allocation14], %s643
        %s645 = smul.u32 8, %s42
        %s646 = smul.u32 8, %s42
        %s647 = smul.u32 8, %s42
        %v649 = vld [vmem:[%s566] sm:$0xff]
        %v650 = vld [vmem:[%s566 + $0x8] sm:$0xff]
        %v651 = vld [vmem:[%s566 + $0x10] sm:$0xff]
        %v652 = vld [vmem:[%s566 + $0x18] sm:$0xff]
        %v653 = vld [vmem:[%s566 + $0x20] sm:$0xff]
        %v654 = vld [vmem:[%s566 + $0x28] sm:$0xff]
        %v655 = vld [vmem:[%s566 + $0x30] sm:$0xff]
        %v656 = vld [vmem:[%s566 + $0x38] sm:$0xff]
        %v657 = vld [vmem:[%s574] sm:$0x1]
        %v659 = vlaneseq
        %v660 = vshrl.u32 %v659, 7
        %v661 = vsub.s32 0, %v660
        %v662 = vrot.slane %v657, %v661
        %v664 = vadd.f32 %v649, %v662
        %v665 = vadd.f32 %v650, %v662
        %v666 = vadd.f32 %v651, %v662
        %v667 = vadd.f32 %v652, %v662
        %v668 = vadd.f32 %v653, %v662
        %v669 = vadd.f32 %v654, %v662
        %v670 = vadd.f32 %v655, %v662
        %v671 = vadd.f32 %v656, %v662
        %v672 = vld [vmem:[#allocation7] sm:$0xff]
        %v673 = vld [vmem:[#allocation7 + $0x8] sm:$0xff]
        %v674 = vld [vmem:[#allocation7 + $0x10] sm:$0xff]
        %v675 = vld [vmem:[#allocation7 + $0x18] sm:$0xff]
        %v676 = vld [vmem:[#allocation7 + $0x20] sm:$0xff]
        %v677 = vld [vmem:[#allocation7 + $0x28] sm:$0xff]
        %v678 = vld [vmem:[#allocation7 + $0x30] sm:$0xff]
        %v679 = vld [vmem:[#allocation7 + $0x38] sm:$0xff]
        %v680 = vadd.f32 %v664, %v672
        %v681 = vadd.f32 %v665, %v673
        %v682 = vadd.f32 %v666, %v674
        %v683 = vadd.f32 %v667, %v675
        %v684 = vadd.f32 %v668, %v676
        %v685 = vadd.f32 %v669, %v677
        %v686 = vadd.f32 %v670, %v678
        %v687 = vadd.f32 %v671, %v679
        %v688 = vld [vmem:[%s3] sm:$0x1]
        %v689 = vld [vmem:[%s4] sm:$0x1]
        %690 = vadd.xlane.f32.xlu0 %v680
        %v691 = vpop.xlane.xlu0 %690
        %692 = vadd.xlane.f32.xlu0 %v681
        %v693 = vpop.xlane.xlu0 %692
        %694 = vadd.xlane.f32.xlu0 %v682
        %v695 = vpop.xlane.xlu0 %694
        %696 = vadd.xlane.f32.xlu0 %v683
        %v697 = vpop.xlane.xlu0 %696
        %698 = vadd.xlane.f32.xlu0 %v684
        %v699 = vpop.xlane.xlu0 %698
        %700 = vadd.xlane.f32.xlu0 %v685
        %v701 = vpop.xlane.xlu0 %700
        %702 = vadd.xlane.f32.xlu0 %v686
        %v703 = vpop.xlane.xlu0 %702
        %704 = vadd.xlane.f32.xlu0 %v687
        %v705 = vpop.xlane.xlu0 %704
        %v706 = vmul.f32 %v680, %v680
        %v707 = vmul.f32 %v681, %v681
        %v708 = vmul.f32 %v682, %v682
        %v709 = vmul.f32 %v683, %v683
        %v710 = vmul.f32 %v684, %v684
        %v711 = vmul.f32 %v685, %v685
        %v712 = vmul.f32 %v686, %v686
        %v713 = vmul.f32 %v687, %v687
        %714 = vadd.xlane.f32.xlu0 %v706
        %v715 = vpop.xlane.xlu0 %714
        %716 = vadd.xlane.f32.xlu0 %v707
        %v717 = vpop.xlane.xlu0 %716
        %718 = vadd.xlane.f32.xlu0 %v708
        %v719 = vpop.xlane.xlu0 %718
        %720 = vadd.xlane.f32.xlu0 %v709
        %v721 = vpop.xlane.xlu0 %720
        %722 = vadd.xlane.f32.xlu0 %v710
        %v723 = vpop.xlane.xlu0 %722
        %724 = vadd.xlane.f32.xlu0 %v711
        %v725 = vpop.xlane.xlu0 %724
        %726 = vadd.xlane.f32.xlu0 %v712
        %v727 = vpop.xlane.xlu0 %726
        %728 = vadd.xlane.f32.xlu0 %v713
        %v729 = vpop.xlane.xlu0 %728
        %v730 = vmul.f32 %v691, 0.03125
        %v731 = vmul.f32 %v693, 0.03125
        %v732 = vmul.f32 %v695, 0.03125
        %v733 = vmul.f32 %v697, 0.03125
        %v734 = vmul.f32 %v699, 0.03125
        %v735 = vmul.f32 %v701, 0.03125
        %v736 = vmul.f32 %v703, 0.03125
        %v737 = vmul.f32 %v705, 0.03125
        %v738 = vmul.f32 %v715, 0.03125
        %v739 = vmul.f32 %v717, 0.03125
        %v740 = vmul.f32 %v719, 0.03125
        %v741 = vmul.f32 %v721, 0.03125
        %v742 = vmul.f32 %v723, 0.03125
        %v743 = vmul.f32 %v725, 0.03125
        %v744 = vmul.f32 %v727, 0.03125
        %v745 = vmul.f32 %v729, 0.03125
        %v746 = vmul.f32 %v730, %v730
        %v747 = vmul.f32 %v731, %v731
        %v748 = vmul.f32 %v732, %v732
        %v749 = vmul.f32 %v733, %v733
        %v750 = vmul.f32 %v734, %v734
        %v751 = vmul.f32 %v735, %v735
        %v752 = vmul.f32 %v736, %v736
        %v753 = vmul.f32 %v737, %v737
        %v754 = vsub.f32 %v738, %v746
        %v755 = vsub.f32 %v739, %v747
        %v756 = vsub.f32 %v740, %v748
        %v757 = vsub.f32 %v741, %v749
        %v758 = vsub.f32 %v742, %v750
        %v759 = vsub.f32 %v743, %v751
        %v760 = vsub.f32 %v744, %v752
        %v761 = vsub.f32 %v745, %v753
        %v762 = vsub.f32 %v680, %v730
        %v763 = vsub.f32 %v681, %v731
        %v764 = vsub.f32 %v682, %v732
        %v765 = vsub.f32 %v683, %v733
        %v766 = vsub.f32 %v684, %v734
        %v767 = vsub.f32 %v685, %v735
        %v768 = vsub.f32 %v686, %v736
        %v769 = vsub.f32 %v687, %v737
        %v770 = vadd.f32 %v754, 1e-05
        %v771 = vadd.f32 %v755, 1e-05
        %v772 = vadd.f32 %v756, 1e-05
        %v773 = vadd.f32 %v757, 1e-05
        %v774 = vadd.f32 %v758, 1e-05
        %v775 = vadd.f32 %v759, 1e-05
        %v776 = vadd.f32 %v760, 1e-05
        %v777 = vadd.f32 %v761, 1e-05
        %v778 = vrsqrt.pop %v770
        %v779 = vrsqrt.pop %v771
        %v780 = vrsqrt.pop %v772
        %v781 = vrsqrt.pop %v773
        %v782 = vrsqrt.pop %v774
        %v783 = vrsqrt.pop %v775
        %v784 = vrsqrt.pop %v776
        %v785 = vrsqrt.pop %v777
        %v786 = vmul.f32 %v762, %v778
        %v787 = vmul.f32 %v763, %v779
        %v788 = vmul.f32 %v764, %v780
        %v789 = vmul.f32 %v765, %v781
        %v790 = vmul.f32 %v766, %v782
        %v791 = vmul.f32 %v767, %v783
        %v792 = vmul.f32 %v768, %v784
        %v793 = vmul.f32 %v769, %v785
        %v795 = vlaneseq
        %v796 = vshrl.u32 %v795, 7
        %v797 = vsub.s32 0, %v796
        %v798 = vrot.slane %v688, %v797
        %v800 = vmul.f32 %v786, %v798
        %v801 = vmul.f32 %v787, %v798
        %v802 = vmul.f32 %v788, %v798
        %v803 = vmul.f32 %v789, %v798
        %v804 = vmul.f32 %v790, %v798
        %v805 = vmul.f32 %v791, %v798
        %v806 = vmul.f32 %v792, %v798
        %v807 = vmul.f32 %v793, %v798
        %v809 = vlaneseq
        %v810 = vshrl.u32 %v809, 7
        %v811 = vsub.s32 0, %v810
        %v812 = vrot.slane %v689, %v811
        %v814 = vadd.f32 %v800, %v812
        %v815 = vadd.f32 %v801, %v812
        %v816 = vadd.f32 %v802, %v812
        %v817 = vadd.f32 %v803, %v812
        %v818 = vadd.f32 %v804, %v812
        %v819 = vadd.f32 %v805, %v812
        %v820 = vadd.f32 %v806, %v812
        %v821 = vadd.f32 %v807, %v812
        %v822 = vpack.c.bf16 %v815, %v814
        %v823 = vpack.c.bf16 %v817, %v816
        %v824 = vpack.c.bf16 %v819, %v818
        %v825 = vpack.c.bf16 %v821, %v820
        %v826 = vld [vmem:[#allocation8] sm:$0xf]
        %v827 = vld [vmem:[#allocation8 + $0x4] sm:$0xf]
        %v828 = vld [vmem:[#allocation8 + $0x8] sm:$0xf]
        %v829 = vld [vmem:[#allocation8 + $0xc] sm:$0xf]
        %v830 = vld [vmem:[#allocation8 + $0x10] sm:$0xf]
        %v831 = vld [vmem:[#allocation8 + $0x14] sm:$0xf]
        %v832 = vld [vmem:[#allocation8 + $0x18] sm:$0xf]
        %v833 = vld [vmem:[#allocation8 + $0x1c] sm:$0xf]
        %v834 = vld [vmem:[#allocation8 + $0x20] sm:$0xf]
        %v835 = vld [vmem:[#allocation8 + $0x24] sm:$0xf]
        %v836 = vld [vmem:[#allocation8 + $0x28] sm:$0xf]
        %v837 = vld [vmem:[#allocation8 + $0x2c] sm:$0xf]
        %v838 = vld [vmem:[#allocation8 + $0x30] sm:$0xf]
        %v839 = vld [vmem:[#allocation8 + $0x34] sm:$0xf]
        %v840 = vld [vmem:[#allocation8 + $0x38] sm:$0xf]
        %v841 = vld [vmem:[#allocation8 + $0x3c] sm:$0xf]
        %v842 = vld [vmem:[%s6] sm:$0x1]
        %v844 = vlaneseq
        %v845 = vshrl.u32 %v844, 7
        %v846 = vsub.s32 0, %v845
        %v847 = vrot.slane %v842, %v846
        %v865 = vunpack.c.l.b16 %v826
        %v866 = vunpack.c.l.b16 %v827
        %v867 = vunpack.c.l.b16 %v828
        %v868 = vunpack.c.l.b16 %v829
        %v869 = vunpack.c.l.b16 %v830
        %v870 = vunpack.c.l.b16 %v831
        %v871 = vunpack.c.l.b16 %v832
        %v872 = vunpack.c.l.b16 %v833
        %v873 = vunpack.c.l.b16 %v834
        %v874 = vunpack.c.l.b16 %v835
        %v875 = vunpack.c.l.b16 %v836
        %v876 = vunpack.c.l.b16 %v837
        %v877 = vunpack.c.l.b16 %v838
        %v878 = vunpack.c.l.b16 %v839
        %v879 = vunpack.c.l.b16 %v840
        %v880 = vunpack.c.l.b16 %v841
        %v881 = vpack.c.b16 %v866, %v865
        %v882 = vpack.c.b16 %v868, %v867
        %v883 = vpack.c.b16 %v870, %v869
        %v884 = vpack.c.b16 %v872, %v871
        %v885 = vpack.c.b16 %v874, %v873
        %v886 = vpack.c.b16 %v876, %v875
        %v887 = vpack.c.b16 %v878, %v877
        %v888 = vpack.c.b16 %v880, %v879
        %897 = vmatprep.subr.bf16.mxu0 0
        %898 = vmatpush1.bf16.msra.mxu0 %v888
        %899 = vmatprep.subr.bf16.mxu0 0
        %900 = vmatpush1.bf16.msra.mxu0 %v887
        %901 = vmatprep.subr.bf16.mxu0 0
        %902 = vmatpush1.bf16.msra.mxu0 %v886
        %903 = vmatprep.subr.bf16.mxu0 0
        %904 = vmatpush1.bf16.msra.mxu0 %v885
        %905 = vmatprep.subr.bf16.mxu0 0
        %906 = vmatpush1.bf16.msra.mxu0 %v884
        %907 = vmatprep.subr.bf16.mxu0 0
        %908 = vmatpush1.bf16.msra.mxu0 %v883
        %909 = vmatprep.subr.bf16.mxu0 0
        %910 = vmatpush1.bf16.msra.mxu0 %v882
        %911 = vmatprep.subr.bf16.mxu0 0
        %912 = vmatpush1.bf16.msra.mxu0 %v881
        %913 = vmatprep.subr.bf16.mxu0 0
        %914 = vmatpush2.bf16.msra.mxu0 0
        %915 = vmatprep.subr.bf16.mxu0 0
        %916 = vmatpush2.bf16.msra.mxu0 0
        %917 = vmatprep.subr.bf16.mxu0 0
        %918 = vmatpush2.bf16.msra.mxu0 0
        %919 = vmatprep.subr.bf16.mxu0 0
        %920 = vmatpush2.bf16.msra.mxu0 0
        %921 = vmatprep.subr.bf16.mxu0 0
        %922 = vmatpush2.bf16.msra.mxu0 0
        %923 = vmatprep.subr.bf16.mxu0 0
        %924 = vmatpush2.bf16.msra.mxu0 0
        %925 = vmatprep.subr.bf16.mxu0 0
        %926 = vmatpush2.bf16.msra.mxu0 0
        %927 = vmatprep.subr.bf16.mxu0 0
        %928 = vmatpush2.bf16.msra.mxu0 0
        %929 = vmatprep.mubr.bf16.mxu0 0
        %930 = vmatmul.mubr.bf16.gmra.mxu0 %v822
        %v931 = vpop.f32.mrf.mxu0
        %v932 = vadd.f32 %v847, %v931
        %v933 = vpop.f32.mrf.mxu0
        %v934 = vpop.f32.mrf.mxu0
        %v935 = vadd.f32 %v847, %v934
        %v936 = vpop.f32.mrf.mxu0
        %937 = vmatprep.mubr.bf16.mxu0 0
        %938 = vmatmul.mubr.bf16.gmra.mxu0 %v823
        %v939 = vpop.f32.mrf.mxu0
        %v940 = vadd.f32 %v847, %v939
        %v941 = vpop.f32.mrf.mxu0
        %v942 = vpop.f32.mrf.mxu0
        %v943 = vadd.f32 %v847, %v942
        %v944 = vpop.f32.mrf.mxu0
        %945 = vmatprep.mubr.bf16.mxu0 0
        %946 = vmatmul.mubr.bf16.gmra.mxu0 %v824
        %v947 = vpop.f32.mrf.mxu0
        %v948 = vadd.f32 %v847, %v947
        %v949 = vpop.f32.mrf.mxu0
        %v950 = vpop.f32.mrf.mxu0
        %v951 = vadd.f32 %v847, %v950
        %v952 = vpop.f32.mrf.mxu0
        %953 = vmatprep.mubr.bf16.mxu0 0
        %954 = vmatmul.mubr.bf16.gmra.mxu0 %v825
        %v955 = vpop.f32.mrf.mxu0
        %v956 = vadd.f32 %v847, %v955
        %v957 = vpop.f32.mrf.mxu0
        %v958 = vpop.f32.mrf.mxu0
        %v959 = vadd.f32 %v847, %v958
        %v960 = vpop.f32.mrf.mxu0
        %961 = vdwg.mxu0
        %v962 = vmul.f32 %v932, 0.5
        %v963 = vmul.f32 %v935, 0.5
        %v964 = vmul.f32 %v940, 0.5
        %v965 = vmul.f32 %v943, 0.5
        %v966 = vmul.f32 %v948, 0.5
        %v967 = vmul.f32 %v951, 0.5
        %v968 = vmul.f32 %v956, 0.5
        %v969 = vmul.f32 %v959, 0.5
        %v970 = vmul.f32 %v932, 0.70710677
        %v971 = vmul.f32 %v935, 0.70710677
        %v972 = vmul.f32 %v940, 0.70710677
        %v973 = vmul.f32 %v943, 0.70710677
        %v974 = vmul.f32 %v948, 0.70710677
        %v975 = vmul.f32 %v951, 0.70710677
        %v976 = vmul.f32 %v956, 0.70710677
        %v977 = vmul.f32 %v959, 0.70710677
        %v978 = verf.f32.pop %v970
        %v979 = verf.f32.pop %v971
        %v980 = verf.f32.pop %v972
        %v981 = verf.f32.pop %v973
        %v982 = verf.f32.pop %v974
        %v983 = verf.f32.pop %v975
        %v984 = verf.f32.pop %v976
        %v985 = verf.f32.pop %v977
        %v986 = vadd.f32 %v978, 1.0
        %v987 = vadd.f32 %v979, 1.0
        %v988 = vadd.f32 %v980, 1.0
        %v989 = vadd.f32 %v981, 1.0
        %v990 = vadd.f32 %v982, 1.0
        %v991 = vadd.f32 %v983, 1.0
        %v992 = vadd.f32 %v984, 1.0
        %v993 = vadd.f32 %v985, 1.0
        %v994 = vmul.f32 %v962, %v986
        %v995 = vmul.f32 %v963, %v987
        %v996 = vmul.f32 %v964, %v988
        %v997 = vmul.f32 %v965, %v989
        %v998 = vmul.f32 %v966, %v990
        %v999 = vmul.f32 %v967, %v991
        %v1000 = vmul.f32 %v968, %v992
        %v1001 = vmul.f32 %v969, %v993
        %v1002 = vpack.c.bf16 %v995, %v994
        %v1003 = vpack.c.bf16 %v997, %v996
        %v1004 = vpack.c.bf16 %v999, %v998
        %v1005 = vpack.c.bf16 %v1001, %v1000
        %v1006 = vld [vmem:[#allocation10] sm:$0xf]
        %v1007 = vld [vmem:[#allocation10 + $0x4] sm:$0xf]
        %v1008 = vld [vmem:[#allocation10 + $0x8] sm:$0xf]
        %v1009 = vld [vmem:[#allocation10 + $0xc] sm:$0xf]
        %v1010 = vld [vmem:[#allocation10 + $0x10] sm:$0xf]
        %v1011 = vld [vmem:[#allocation10 + $0x14] sm:$0xf]
        %v1012 = vld [vmem:[#allocation10 + $0x18] sm:$0xf]
        %v1013 = vld [vmem:[#allocation10 + $0x1c] sm:$0xf]
        %v1014 = vld [vmem:[#allocation10 + $0x20] sm:$0xf]
        %v1015 = vld [vmem:[#allocation10 + $0x24] sm:$0xf]
        %v1016 = vld [vmem:[#allocation10 + $0x28] sm:$0xf]
        %v1017 = vld [vmem:[#allocation10 + $0x2c] sm:$0xf]
        %v1018 = vld [vmem:[#allocation10 + $0x30] sm:$0xf]
        %v1019 = vld [vmem:[#allocation10 + $0x34] sm:$0xf]
        %v1020 = vld [vmem:[#allocation10 + $0x38] sm:$0xf]
        %v1021 = vld [vmem:[#allocation10 + $0x3c] sm:$0xf]
        %v1022 = vld [vmem:[%s8] sm:$0x1]
        %v1024 = vlaneseq
        %v1025 = vshrl.u32 %v1024, 7
        %v1026 = vsub.s32 0, %v1025
        %v1027 = vrot.slane %v1022, %v1026
        %v1045 = vunpack.c.l.b16 %v1006
        %v1046 = vunpack.c.l.b16 %v1007
        %v1047 = vunpack.c.l.b16 %v1008
        %v1048 = vunpack.c.l.b16 %v1009
        %v1049 = vunpack.c.l.b16 %v1010
        %v1050 = vunpack.c.l.b16 %v1011
        %v1051 = vunpack.c.l.b16 %v1012
        %v1052 = vunpack.c.l.b16 %v1013
        %v1053 = vunpack.c.l.b16 %v1014
        %v1054 = vunpack.c.l.b16 %v1015
        %v1055 = vunpack.c.l.b16 %v1016
        %v1056 = vunpack.c.l.b16 %v1017
        %v1057 = vunpack.c.l.b16 %v1018
        %v1058 = vunpack.c.l.b16 %v1019
        %v1059 = vunpack.c.l.b16 %v1020
        %v1060 = vunpack.c.l.b16 %v1021
        %v1061 = vpack.c.b16 %v1046, %v1045
        %v1062 = vpack.c.b16 %v1048, %v1047
        %v1063 = vpack.c.b16 %v1050, %v1049
        %v1064 = vpack.c.b16 %v1052, %v1051
        %v1065 = vpack.c.b16 %v1054, %v1053
        %v1066 = vpack.c.b16 %v1056, %v1055
        %v1067 = vpack.c.b16 %v1058, %v1057
        %v1068 = vpack.c.b16 %v1060, %v1059
        %1077 = vmatprep.subr.bf16.mxu0 0
        %1078 = vmatpush1.bf16.msra.mxu0 %v1068
        %1079 = vmatprep.subr.bf16.mxu0 0
        %1080 = vmatpush1.bf16.msra.mxu0 %v1067
        %1081 = vmatprep.subr.bf16.mxu0 0
        %1082 = vmatpush1.bf16.msra.mxu0 %v1066
        %1083 = vmatprep.subr.bf16.mxu0 0
        %1084 = vmatpush1.bf16.msra.mxu0 %v1065
        %1085 = vmatprep.subr.bf16.mxu0 0
        %1086 = vmatpush1.bf16.msra.mxu0 %v1064
        %1087 = vmatprep.subr.bf16.mxu0 0
        %1088 = vmatpush1.bf16.msra.mxu0 %v1063
        %1089 = vmatprep.subr.bf16.mxu0 0
        %1090 = vmatpush1.bf16.msra.mxu0 %v1062
        %1091 = vmatprep.subr.bf16.mxu0 0
        %1092 = vmatpush1.bf16.msra.mxu0 %v1061
        %1093 = vmatprep.subr.bf16.mxu0 0
        %1094 = vmatpush2.bf16.msra.mxu0 0
        %1095 = vmatprep.subr.bf16.mxu0 0
        %1096 = vmatpush2.bf16.msra.mxu0 0
        %1097 = vmatprep.subr.bf16.mxu0 0
        %1098 = vmatpush2.bf16.msra.mxu0 0
        %1099 = vmatprep.subr.bf16.mxu0 0
        %1100 = vmatpush2.bf16.msra.mxu0 0
        %1101 = vmatprep.subr.bf16.mxu0 0
        %1102 = vmatpush2.bf16.msra.mxu0 0
        %1103 = vmatprep.subr.bf16.mxu0 0
        %1104 = vmatpush2.bf16.msra.mxu0 0
        %1105 = vmatprep.subr.bf16.mxu0 0
        %1106 = vmatpush2.bf16.msra.mxu0 0
        %1107 = vmatprep.subr.bf16.mxu0 0
        %1108 = vmatpush2.bf16.msra.mxu0 0
        %1109 = vmatprep.mubr.bf16.mxu0 0
        %1110 = vmatmul.mubr.bf16.gmra.mxu0 %v1002
        %v1111 = vpop.f32.mrf.mxu0
        %v1112 = vadd.f32 %v1027, %v1111
        %v1113 = vpop.f32.mrf.mxu0
        %v1114 = vpop.f32.mrf.mxu0
        %v1115 = vadd.f32 %v1027, %v1114
        %v1116 = vpop.f32.mrf.mxu0
        %1117 = vmatprep.mubr.bf16.mxu0 0
        %1118 = vmatmul.mubr.bf16.gmra.mxu0 %v1003
        %v1119 = vpop.f32.mrf.mxu0
        %v1120 = vadd.f32 %v1027, %v1119
        %v1121 = vpop.f32.mrf.mxu0
        %v1122 = vpop.f32.mrf.mxu0
        %v1123 = vadd.f32 %v1027, %v1122
        %v1124 = vpop.f32.mrf.mxu0
        %1125 = vmatprep.mubr.bf16.mxu0 0
        %1126 = vmatmul.mubr.bf16.gmra.mxu0 %v1004
        %v1127 = vpop.f32.mrf.mxu0
        %v1128 = vadd.f32 %v1027, %v1127
        %v1129 = vpop.f32.mrf.mxu0
        %v1130 = vpop.f32.mrf.mxu0
        %v1131 = vadd.f32 %v1027, %v1130
        %v1132 = vpop.f32.mrf.mxu0
        %1133 = vmatprep.mubr.bf16.mxu0 0
        %1134 = vmatmul.mubr.bf16.gmra.mxu0 %v1005
        %v1135 = vpop.f32.mrf.mxu0
        %v1136 = vadd.f32 %v1027, %v1135
        %v1137 = vpop.f32.mrf.mxu0
        %v1138 = vpop.f32.mrf.mxu0
        %v1139 = vadd.f32 %v1027, %v1138
        %v1140 = vpop.f32.mrf.mxu0
        %1141 = vdwg.mxu0
        %v1142 = vmul.f32 %v1112, 0.5
        %v1143 = vmul.f32 %v1115, 0.5
        %v1144 = vmul.f32 %v1120, 0.5
        %v1145 = vmul.f32 %v1123, 0.5
        %v1146 = vmul.f32 %v1128, 0.5
        %v1147 = vmul.f32 %v1131, 0.5
        %v1148 = vmul.f32 %v1136, 0.5
        %v1149 = vmul.f32 %v1139, 0.5
        %v1150 = vmul.f32 %v1112, 0.70710677
        %v1151 = vmul.f32 %v1115, 0.70710677
        %v1152 = vmul.f32 %v1120, 0.70710677
        %v1153 = vmul.f32 %v1123, 0.70710677
        %v1154 = vmul.f32 %v1128, 0.70710677
        %v1155 = vmul.f32 %v1131, 0.70710677
        %v1156 = vmul.f32 %v1136, 0.70710677
        %v1157 = vmul.f32 %v1139, 0.70710677
        %v1158 = verf.f32.pop %v1150
        %v1159 = verf.f32.pop %v1151
        %v1160 = verf.f32.pop %v1152
        %v1161 = verf.f32.pop %v1153
        %v1162 = verf.f32.pop %v1154
        %v1163 = verf.f32.pop %v1155
        %v1164 = verf.f32.pop %v1156
        %v1165 = verf.f32.pop %v1157
        %v1166 = vadd.f32 %v1158, 1.0
        %v1167 = vadd.f32 %v1159, 1.0
        %v1168 = vadd.f32 %v1160, 1.0
        %v1169 = vadd.f32 %v1161, 1.0
        %v1170 = vadd.f32 %v1162, 1.0
        %v1171 = vadd.f32 %v1163, 1.0
        %v1172 = vadd.f32 %v1164, 1.0
        %v1173 = vadd.f32 %v1165, 1.0
        %v1174 = vmul.f32 %v1142, %v1166
        %v1175 = vmul.f32 %v1143, %v1167
        %v1176 = vmul.f32 %v1144, %v1168
        %v1177 = vmul.f32 %v1145, %v1169
        %v1178 = vmul.f32 %v1146, %v1170
        %v1179 = vmul.f32 %v1147, %v1171
        %v1180 = vmul.f32 %v1148, %v1172
        %v1181 = vmul.f32 %v1149, %v1173
        %v1182 = vpack.c.bf16 %v1175, %v1174
        %v1183 = vpack.c.bf16 %v1177, %v1176
        %v1184 = vpack.c.bf16 %v1179, %v1178
        %v1185 = vpack.c.bf16 %v1181, %v1180
        %v1186 = vld [vmem:[#allocation11] sm:$0xf]
        %v1187 = vld [vmem:[#allocation11 + $0x4] sm:$0xf]
        %v1188 = vld [vmem:[#allocation11 + $0x8] sm:$0xf]
        %v1189 = vld [vmem:[#allocation11 + $0xc] sm:$0xf]
        %v1190 = vld [vmem:[#allocation11 + $0x10] sm:$0xf]
        %v1191 = vld [vmem:[#allocation11 + $0x14] sm:$0xf]
        %v1192 = vld [vmem:[#allocation11 + $0x18] sm:$0xf]
        %v1193 = vld [vmem:[#allocation11 + $0x1c] sm:$0xf]
        %v1194 = vld [vmem:[#allocation11 + $0x20] sm:$0xf]
        %v1195 = vld [vmem:[#allocation11 + $0x24] sm:$0xf]
        %v1196 = vld [vmem:[#allocation11 + $0x28] sm:$0xf]
        %v1197 = vld [vmem:[#allocation11 + $0x2c] sm:$0xf]
        %v1198 = vld [vmem:[#allocation11 + $0x30] sm:$0xf]
        %v1199 = vld [vmem:[#allocation11 + $0x34] sm:$0xf]
        %v1200 = vld [vmem:[#allocation11 + $0x38] sm:$0xf]
        %v1201 = vld [vmem:[#allocation11 + $0x3c] sm:$0xf]
        %v1202 = vld [vmem:[%s10] sm:$0x1]
        %v1204 = vlaneseq
        %v1205 = vshrl.u32 %v1204, 7
        %v1206 = vsub.s32 0, %v1205
        %v1207 = vrot.slane %v1202, %v1206
        %v1225 = vunpack.c.l.b16 %v1186
        %v1226 = vunpack.c.l.b16 %v1187
        %v1227 = vunpack.c.l.b16 %v1188
        %v1228 = vunpack.c.l.b16 %v1189
        %v1229 = vunpack.c.l.b16 %v1190
        %v1230 = vunpack.c.l.b16 %v1191
        %v1231 = vunpack.c.l.b16 %v1192
        %v1232 = vunpack.c.l.b16 %v1193
        %v1233 = vunpack.c.l.b16 %v1194
        %v1234 = vunpack.c.l.b16 %v1195
        %v1235 = vunpack.c.l.b16 %v1196
        %v1236 = vunpack.c.l.b16 %v1197
        %v1237 = vunpack.c.l.b16 %v1198
        %v1238 = vunpack.c.l.b16 %v1199
        %v1239 = vunpack.c.l.b16 %v1200
        %v1240 = vunpack.c.l.b16 %v1201
        %v1241 = vpack.c.b16 %v1226, %v1225
        %v1242 = vpack.c.b16 %v1228, %v1227
        %v1243 = vpack.c.b16 %v1230, %v1229
        %v1244 = vpack.c.b16 %v1232, %v1231
        %v1245 = vpack.c.b16 %v1234, %v1233
        %v1246 = vpack.c.b16 %v1236, %v1235
        %v1247 = vpack.c.b16 %v1238, %v1237
        %v1248 = vpack.c.b16 %v1240, %v1239
        %1257 = vmatprep.subr.bf16.mxu0 0
        %1258 = vmatpush1.bf16.msra.mxu0 %v1248
        %1259 = vmatprep.subr.bf16.mxu0 0
        %1260 = vmatpush1.bf16.msra.mxu0 %v1247
        %1261 = vmatprep.subr.bf16.mxu0 0
        %1262 = vmatpush1.bf16.msra.mxu0 %v1246
        %1263 = vmatprep.subr.bf16.mxu0 0
        %1264 = vmatpush1.bf16.msra.mxu0 %v1245
        %1265 = vmatprep.subr.bf16.mxu0 0
        %1266 = vmatpush1.bf16.msra.mxu0 %v1244
        %1267 = vmatprep.subr.bf16.mxu0 0
        %1268 = vmatpush1.bf16.msra.mxu0 %v1243
        %1269 = vmatprep.subr.bf16.mxu0 0
        %1270 = vmatpush1.bf16.msra.mxu0 %v1242
        %1271 = vmatprep.subr.bf16.mxu0 0
        %1272 = vmatpush1.bf16.msra.mxu0 %v1241
        %1273 = vmatprep.subr.bf16.mxu0 0
        %1274 = vmatpush2.bf16.msra.mxu0 0
        %1275 = vmatprep.subr.bf16.mxu0 0
        %1276 = vmatpush2.bf16.msra.mxu0 0
        %1277 = vmatprep.subr.bf16.mxu0 0
        %1278 = vmatpush2.bf16.msra.mxu0 0
        %1279 = vmatprep.subr.bf16.mxu0 0
        %1280 = vmatpush2.bf16.msra.mxu0 0
        %1281 = vmatprep.subr.bf16.mxu0 0
        %1282 = vmatpush2.bf16.msra.mxu0 0
        %1283 = vmatprep.subr.bf16.mxu0 0
        %1284 = vmatpush2.bf16.msra.mxu0 0
        %1285 = vmatprep.subr.bf16.mxu0 0
        %1286 = vmatpush2.bf16.msra.mxu0 0
        %1287 = vmatprep.subr.bf16.mxu0 0
        %1288 = vmatpush2.bf16.msra.mxu0 0
        %1289 = vmatprep.mubr.bf16.mxu0 0
        %1290 = vmatmul.mubr.bf16.gmra.mxu0 %v1182
        %v1291 = vpop.f32.mrf.mxu0
        %v1292 = vadd.f32 %v1207, %v1291
        %v1293 = vpop.f32.mrf.mxu0
        %v1294 = vpop.f32.mrf.mxu0
        %v1295 = vadd.f32 %v1207, %v1294
        %v1296 = vpop.f32.mrf.mxu0
        %1297 = vmatprep.mubr.bf16.mxu0 0
        %1298 = vmatmul.mubr.bf16.gmra.mxu0 %v1183
        %v1299 = vpop.f32.mrf.mxu0
        %v1300 = vadd.f32 %v1207, %v1299
        %v1301 = vpop.f32.mrf.mxu0
        %v1302 = vpop.f32.mrf.mxu0
        %v1303 = vadd.f32 %v1207, %v1302
        %v1304 = vpop.f32.mrf.mxu0
        %1305 = vmatprep.mubr.bf16.mxu0 0
        %1306 = vmatmul.mubr.bf16.gmra.mxu0 %v1184
        %v1307 = vpop.f32.mrf.mxu0
        %v1308 = vadd.f32 %v1207, %v1307
        %v1309 = vpop.f32.mrf.mxu0
        %v1310 = vpop.f32.mrf.mxu0
        %v1311 = vadd.f32 %v1207, %v1310
        %v1312 = vpop.f32.mrf.mxu0
        %1313 = vmatprep.mubr.bf16.mxu0 0
        %1314 = vmatmul.mubr.bf16.gmra.mxu0 %v1185
        %v1315 = vpop.f32.mrf.mxu0
        %v1316 = vadd.f32 %v1207, %v1315
        %v1317 = vpop.f32.mrf.mxu0
        %v1318 = vpop.f32.mrf.mxu0
        %v1319 = vadd.f32 %v1207, %v1318
        %v1320 = vpop.f32.mrf.mxu0
        %1321 = vdwg.mxu0
        %v1322 = vld [vmem:[%s11] sm:$0x1]
        %v1323 = vld [vmem:[%s12] sm:$0x1]
        %1324 = vadd.xlane.f32.xlu0 %v1292
        %v1325 = vpop.xlane.xlu0 %1324
        %1326 = vadd.xlane.f32.xlu0 %v1295
        %v1327 = vpop.xlane.xlu0 %1326
        %1328 = vadd.xlane.f32.xlu0 %v1300
        %v1329 = vpop.xlane.xlu0 %1328
        %1330 = vadd.xlane.f32.xlu0 %v1303
        %v1331 = vpop.xlane.xlu0 %1330
        %1332 = vadd.xlane.f32.xlu0 %v1308
        %v1333 = vpop.xlane.xlu0 %1332
        %1334 = vadd.xlane.f32.xlu0 %v1311
        %v1335 = vpop.xlane.xlu0 %1334
        %1336 = vadd.xlane.f32.xlu0 %v1316
        %v1337 = vpop.xlane.xlu0 %1336
        %1338 = vadd.xlane.f32.xlu0 %v1319
        %v1339 = vpop.xlane.xlu0 %1338
        %v1340 = vmul.f32 %v1292, %v1292
        %v1341 = vmul.f32 %v1295, %v1295
        %v1342 = vmul.f32 %v1300, %v1300
        %v1343 = vmul.f32 %v1303, %v1303
        %v1344 = vmul.f32 %v1308, %v1308
        %v1345 = vmul.f32 %v1311, %v1311
        %v1346 = vmul.f32 %v1316, %v1316
        %v1347 = vmul.f32 %v1319, %v1319
        %1348 = vadd.xlane.f32.xlu0 %v1340
        %v1349 = vpop.xlane.xlu0 %1348
        %1350 = vadd.xlane.f32.xlu0 %v1341
        %v1351 = vpop.xlane.xlu0 %1350
        %1352 = vadd.xlane.f32.xlu0 %v1342
        %v1353 = vpop.xlane.xlu0 %1352
        %1354 = vadd.xlane.f32.xlu0 %v1343
        %v1355 = vpop.xlane.xlu0 %1354
        %1356 = vadd.xlane.f32.xlu0 %v1344
        %v1357 = vpop.xlane.xlu0 %1356
        %1358 = vadd.xlane.f32.xlu0 %v1345
        %v1359 = vpop.xlane.xlu0 %1358
        %1360 = vadd.xlane.f32.xlu0 %v1346
        %v1361 = vpop.xlane.xlu0 %1360
        %1362 = vadd.xlane.f32.xlu0 %v1347
        %v1363 = vpop.xlane.xlu0 %1362
        %v1364 = vmul.f32 %v1325, 0.03125
        %v1365 = vmul.f32 %v1327, 0.03125
        %v1366 = vmul.f32 %v1329, 0.03125
        %v1367 = vmul.f32 %v1331, 0.03125
        %v1368 = vmul.f32 %v1333, 0.03125
        %v1369 = vmul.f32 %v1335, 0.03125
        %v1370 = vmul.f32 %v1337, 0.03125
        %v1371 = vmul.f32 %v1339, 0.03125
        %v1372 = vmul.f32 %v1349, 0.03125
        %v1373 = vmul.f32 %v1351, 0.03125
        %v1374 = vmul.f32 %v1353, 0.03125
        %v1375 = vmul.f32 %v1355, 0.03125
        %v1376 = vmul.f32 %v1357, 0.03125
        %v1377 = vmul.f32 %v1359, 0.03125
        %v1378 = vmul.f32 %v1361, 0.03125
        %v1379 = vmul.f32 %v1363, 0.03125
        %v1380 = vmul.f32 %v1364, %v1364
        %v1381 = vmul.f32 %v1365, %v1365
        %v1382 = vmul.f32 %v1366, %v1366
        %v1383 = vmul.f32 %v1367, %v1367
        %v1384 = vmul.f32 %v1368, %v1368
        %v1385 = vmul.f32 %v1369, %v1369
        %v1386 = vmul.f32 %v1370, %v1370
        %v1387 = vmul.f32 %v1371, %v1371
        %v1388 = vsub.f32 %v1372, %v1380
        %v1389 = vsub.f32 %v1373, %v1381
        %v1390 = vsub.f32 %v1374, %v1382
        %v1391 = vsub.f32 %v1375, %v1383
        %v1392 = vsub.f32 %v1376, %v1384
        %v1393 = vsub.f32 %v1377, %v1385
        %v1394 = vsub.f32 %v1378, %v1386
        %v1395 = vsub.f32 %v1379, %v1387
        %v1396 = vsub.f32 %v1292, %v1364
        %v1397 = vsub.f32 %v1295, %v1365
        %v1398 = vsub.f32 %v1300, %v1366
        %v1399 = vsub.f32 %v1303, %v1367
        %v1400 = vsub.f32 %v1308, %v1368
        %v1401 = vsub.f32 %v1311, %v1369
        %v1402 = vsub.f32 %v1316, %v1370
        %v1403 = vsub.f32 %v1319, %v1371
        %v1404 = vadd.f32 %v1388, 1e-05
        %v1405 = vadd.f32 %v1389, 1e-05
        %v1406 = vadd.f32 %v1390, 1e-05
        %v1407 = vadd.f32 %v1391, 1e-05
        %v1408 = vadd.f32 %v1392, 1e-05
        %v1409 = vadd.f32 %v1393, 1e-05
        %v1410 = vadd.f32 %v1394, 1e-05
        %v1411 = vadd.f32 %v1395, 1e-05
        %v1412 = vrsqrt.pop %v1404
        %v1413 = vrsqrt.pop %v1405
        %v1414 = vrsqrt.pop %v1406
        %v1415 = vrsqrt.pop %v1407
        %v1416 = vrsqrt.pop %v1408
        %v1417 = vrsqrt.pop %v1409
        %v1418 = vrsqrt.pop %v1410
        %v1419 = vrsqrt.pop %v1411
        %v1420 = vmul.f32 %v1396, %v1412
        %v1421 = vmul.f32 %v1397, %v1413
        %v1422 = vmul.f32 %v1398, %v1414
        %v1423 = vmul.f32 %v1399, %v1415
        %v1424 = vmul.f32 %v1400, %v1416
        %v1425 = vmul.f32 %v1401, %v1417
        %v1426 = vmul.f32 %v1402, %v1418
        %v1427 = vmul.f32 %v1403, %v1419
        %v1429 = vlaneseq
        %v1430 = vshrl.u32 %v1429, 7
        %v1431 = vsub.s32 0, %v1430
        %v1432 = vrot.slane %v1322, %v1431
        %v1434 = vmul.f32 %v1420, %v1432
        %v1435 = vmul.f32 %v1421, %v1432
        %v1436 = vmul.f32 %v1422, %v1432
        %v1437 = vmul.f32 %v1423, %v1432
        %v1438 = vmul.f32 %v1424, %v1432
        %v1439 = vmul.f32 %v1425, %v1432
        %v1440 = vmul.f32 %v1426, %v1432
        %v1441 = vmul.f32 %v1427, %v1432
        %v1443 = vlaneseq
        %v1444 = vshrl.u32 %v1443, 7
        %v1445 = vsub.s32 0, %v1444
        %v1446 = vrot.slane %v1323, %v1445
        %v1448 = vadd.f32 %v1434, %v1446
        %v1449 = vadd.f32 %v1435, %v1446
        %v1450 = vadd.f32 %v1436, %v1446
        %v1451 = vadd.f32 %v1437, %v1446
        %v1452 = vadd.f32 %v1438, %v1446
        %v1453 = vadd.f32 %v1439, %v1446
        %v1454 = vadd.f32 %v1440, %v1446
        %v1455 = vadd.f32 %v1441, %v1446
        %v1456 = vpack.c.bf16 %v1449, %v1448
        %v1457 = vpack.c.bf16 %v1451, %v1450
        %v1458 = vpack.c.bf16 %v1453, %v1452
        %v1459 = vpack.c.bf16 %v1455, %v1454
        %v1460 = vld [vmem:[#allocation13] sm:$0xf]
        %v1461 = vld [vmem:[#allocation13 + $0x4] sm:$0xf]
        %v1462 = vld [vmem:[#allocation13 + $0x8] sm:$0xf]
        %v1463 = vld [vmem:[#allocation13 + $0xc] sm:$0xf]
        %v1464 = vld [vmem:[#allocation13 + $0x10] sm:$0xf]
        %v1465 = vld [vmem:[#allocation13 + $0x14] sm:$0xf]
        %v1466 = vld [vmem:[#allocation13 + $0x18] sm:$0xf]
        %v1467 = vld [vmem:[#allocation13 + $0x1c] sm:$0xf]
        %v1468 = vld [vmem:[#allocation13 + $0x20] sm:$0xf]
        %v1469 = vld [vmem:[#allocation13 + $0x24] sm:$0xf]
        %v1470 = vld [vmem:[#allocation13 + $0x28] sm:$0xf]
        %v1471 = vld [vmem:[#allocation13 + $0x2c] sm:$0xf]
        %v1472 = vld [vmem:[#allocation13 + $0x30] sm:$0xf]
        %v1473 = vld [vmem:[#allocation13 + $0x34] sm:$0xf]
        %v1474 = vld [vmem:[#allocation13 + $0x38] sm:$0xf]
        %v1475 = vld [vmem:[#allocation13 + $0x3c] sm:$0xf]
        %v1476 = vld [vmem:[%s14] sm:$0x1]
        %v1478 = vlaneseq
        %v1479 = vshrl.u32 %v1478, 7
        %v1480 = vsub.s32 0, %v1479
        %v1481 = vrot.slane %v1476, %v1480
        %v1499 = vunpack.c.l.b16 %v1460
        %v1500 = vunpack.c.l.b16 %v1461
        %v1501 = vunpack.c.l.b16 %v1462
        %v1502 = vunpack.c.l.b16 %v1463
        %v1503 = vunpack.c.l.b16 %v1464
        %v1504 = vunpack.c.l.b16 %v1465
        %v1505 = vunpack.c.l.b16 %v1466
        %v1506 = vunpack.c.l.b16 %v1467
        %v1507 = vunpack.c.l.b16 %v1468
        %v1508 = vunpack.c.l.b16 %v1469
        %v1509 = vunpack.c.l.b16 %v1470
        %v1510 = vunpack.c.l.b16 %v1471
        %v1511 = vunpack.c.l.b16 %v1472
        %v1512 = vunpack.c.l.b16 %v1473
        %v1513 = vunpack.c.l.b16 %v1474
        %v1514 = vunpack.c.l.b16 %v1475
        %v1515 = vpack.c.b16 %v1500, %v1499
        %v1516 = vpack.c.b16 %v1502, %v1501
        %v1517 = vpack.c.b16 %v1504, %v1503
        %v1518 = vpack.c.b16 %v1506, %v1505
        %v1519 = vpack.c.b16 %v1508, %v1507
        %v1520 = vpack.c.b16 %v1510, %v1509
        %v1521 = vpack.c.b16 %v1512, %v1511
        %v1522 = vpack.c.b16 %v1514, %v1513
        %1531 = vmatprep.subr.bf16.mxu0 0
        %1532 = vmatpush1.bf16.msra.mxu0 %v1522
        %1533 = vmatprep.subr.bf16.mxu0 0
        %1534 = vmatpush1.bf16.msra.mxu0 %v1521
        %1535 = vmatprep.subr.bf16.mxu0 0
        %1536 = vmatpush1.bf16.msra.mxu0 %v1520
        %1537 = vmatprep.subr.bf16.mxu0 0
        %1538 = vmatpush1.bf16.msra.mxu0 %v1519
        %1539 = vmatprep.subr.bf16.mxu0 0
        %1540 = vmatpush1.bf16.msra.mxu0 %v1518
        %1541 = vmatprep.subr.bf16.mxu0 0
        %1542 = vmatpush1.bf16.msra.mxu0 %v1517
        %1543 = vmatprep.subr.bf16.mxu0 0
        %1544 = vmatpush1.bf16.msra.mxu0 %v1516
        %1545 = vmatprep.subr.bf16.mxu0 0
        %1546 = vmatpush1.bf16.msra.mxu0 %v1515
        %1547 = vmatprep.subr.bf16.mxu0 0
        %1548 = vmatpush2.bf16.msra.mxu0 0
        %1549 = vmatprep.subr.bf16.mxu0 0
        %1550 = vmatpush2.bf16.msra.mxu0 0
        %1551 = vmatprep.subr.bf16.mxu0 0
        %1552 = vmatpush2.bf16.msra.mxu0 0
        %1553 = vmatprep.subr.bf16.mxu0 0
        %1554 = vmatpush2.bf16.msra.mxu0 0
        %1555 = vmatprep.subr.bf16.mxu0 0
        %1556 = vmatpush2.bf16.msra.mxu0 0
        %1557 = vmatprep.subr.bf16.mxu0 0
        %1558 = vmatpush2.bf16.msra.mxu0 0
        %1559 = vmatprep.subr.bf16.mxu0 0
        %1560 = vmatpush2.bf16.msra.mxu0 0
        %1561 = vmatprep.subr.bf16.mxu0 0
        %1562 = vmatpush2.bf16.msra.mxu0 0
        %1563 = vmatprep.mubr.bf16.mxu0 0
        %1564 = vmatmul.mubr.bf16.gmra.mxu0 %v1456
        %v1565 = vpop.f32.mrf.mxu0
        %v1566 = vadd.f32 %v1481, %v1565
        %v1567 = vpop.f32.mrf.mxu0
        %v1568 = vpop.f32.mrf.mxu0
        %v1569 = vadd.f32 %v1481, %v1568
        %v1570 = vpop.f32.mrf.mxu0
        %1571 = vmatprep.mubr.bf16.mxu0 0
        %1572 = vmatmul.mubr.bf16.gmra.mxu0 %v1457
        %v1573 = vpop.f32.mrf.mxu0
        %v1574 = vadd.f32 %v1481, %v1573
        %v1575 = vpop.f32.mrf.mxu0
        %v1576 = vpop.f32.mrf.mxu0
        %v1577 = vadd.f32 %v1481, %v1576
        %v1578 = vpop.f32.mrf.mxu0
        %1579 = vmatprep.mubr.bf16.mxu0 0
        %1580 = vmatmul.mubr.bf16.gmra.mxu0 %v1458
        %v1581 = vpop.f32.mrf.mxu0
        %v1582 = vadd.f32 %v1481, %v1581
        %v1583 = vpop.f32.mrf.mxu0
        %v1584 = vpop.f32.mrf.mxu0
        %v1585 = vadd.f32 %v1481, %v1584
        %v1586 = vpop.f32.mrf.mxu0
        %1587 = vmatprep.mubr.bf16.mxu0 0
        %1588 = vmatmul.mubr.bf16.gmra.mxu0 %v1459
        %v1589 = vpop.f32.mrf.mxu0
        %v1590 = vadd.f32 %v1481, %v1589
        %v1591 = vpop.f32.mrf.mxu0
        %v1592 = vpop.f32.mrf.mxu0
        %v1593 = vadd.f32 %v1481, %v1592
        %v1594 = vpop.f32.mrf.mxu0
        %1595 = vdwg.mxu0
        %1596 = vst [vmem:[%s644] sm:$0xff] %v1566
        %1597 = vst [vmem:[%s644 + $0x8] sm:$0xff] %v1569
        %1598 = vst [vmem:[%s644 + $0x10] sm:$0xff] %v1574
        %1599 = vst [vmem:[%s644 + $0x18] sm:$0xff] %v1577
        %1600 = vst [vmem:[%s644 + $0x20] sm:$0xff] %v1582
        %1601 = vst [vmem:[%s644 + $0x28] sm:$0xff] %v1585
        %1602 = vst [vmem:[%s644 + $0x30] sm:$0xff] %v1590
        %1603 = vst [vmem:[%s644 + $0x38] sm:$0xff] %v1593
        %s1604 = sand.u32 %s391, 1
        %s1605 = scalar_lea.sflag [#allocation4], %s1604
        %s1606 = sand.u32 %s391, 1
        %s1607 = smul.addr %s1606, 64
        %s1608 = scalar_lea.vmem [#allocation14], %s1607
        // Predicated region
        $region109: #{tpu_custom_call.1} parent=79 // pred_check
          %p1609 = pneg %p401
        $region110: #{tpu_custom_call.1} parent=79 // pred_check_branch
          %1611 = sbr.rel (%p1609) target = $region112
        $region111: #{tpu_custom_call.1} parent=79 // pred_region
          %s1612 = smul.u32 8, %s42
          %s1614 = ssub.s32 1024, 1024
          %1615 = vsyncadd %s1605, %s1614
          %s1616 = smul.addr %s41, 8
          %s1617 = sadd.s32 %s1612, %s1616
          %s1618 = smul.addr %s1617, 128
          %s1619 = scalar_lea.hbm %s15, %s1618
          %s1620 = sshll.u32 %s1608, 4
          %s1621 = int_to_ptr.vmem [resolvable:$true] %s1620
          %1626 = dma.vmem_to_hbm [thread:$0]  %s1621, 1024, %s1619, %s1605, 128, 128, 8
        $region112: #{tpu_custom_call.1} parent=79 // pred_fallthru
          _
      $region80: #{tpu_custom_call.1} parent=5 // pred_fallthru
        _
      %p1627 = scmp.le.s32.totalorder 2, %s32
      // Predicated region
      $region113: #{tpu_custom_call.1} parent=5 // pred_check
        %p1628 = pneg %p1627
      $region114: #{tpu_custom_call.1} parent=5 // pred_check_branch
        %1630 = sbr.rel (%p1628) target = $region116
      $region115: #{tpu_custom_call.1} parent=5 // pred_region
        %s1631 = ssub.s32 %s32, 2
        // Predicated region
        $region117: #{tpu_custom_call.1} parent=115 // pred_check
          %p1632 = pneg %p407
        $region118: #{tpu_custom_call.1} parent=115 // pred_check_branch
          %1634 = sbr.rel (%p1632) target = $region120
        $region119: #{tpu_custom_call.1} parent=115 // pred_region
          %s1635 = sand.u32 %s392, 1
          %s1636 = scalar_lea.sflag [#allocation4], %s1635
          %s1637 = sand.u32 %s392, 1
          %s1638 = smul.addr %s1637, 64
          %s1639 = scalar_lea.vmem [#allocation14], %s1638
          %1640 = dma.done %s1636, 1024
        $region120: #{tpu_custom_call.1} parent=115 // pred_fallthru
          _
      $region116: #{tpu_custom_call.1} parent=5 // pred_fallthru
        _
    $region6: #{tpu_custom_call.1} parent=1 // loop_footer
      %s36 = sadd.s32 1, %s32
    $region7: #{tpu_custom_call.1} parent=1 // loop_footer_branch
      %31 = sbr.rel target = $region3
    $region8: #{tpu_custom_call.1} parent=1 // loop_exit
      _
    %1641 = vsyncpa [#allocation3], 1
    %s1642 = scalar_lea.sflag [#allocation3], 1
    %1643 = vsyncpa %s1642, 1
    %1644 = vsyncpa [#allocation6], 1
    %s1645 = scalar_lea.sflag [#allocation6], 1
    %1646 = vsyncpa %s1645, 1
    %1647 = vsyncpa [#allocation9], 1
    %1648 = vsyncpa [#allocation12], 1
    %1649 = vsyncpa [#allocation4], 1
    %s1650 = scalar_lea.sflag [#allocation4], 1
    %1651 = vsyncpa %s1650, 1

</llo_original>
